<compile_context>
chip_gen: v7x
topology: tpu7x:2x2x1
jax: 0.10.0
libtpu: 0.0.40
codegen_flags: <defaults>
</compile_context>

<pallas_src>
import functools
import numpy as np
import jax
import jax.numpy as jnp
from jax.experimental import pallas as pl
from jax.experimental.pallas import tpu as pltpu

SMPL_SKELETON = {
    0: (-1, 'root'), 3: [0, 'spine1'], 6: [3, 'spine2'], 9: [6, 'spine3'],
    12: [9, 'neck'], 15: [12, 'head'], 2: [0, 'l_hip'], 5: [2, 'l_knee'],
    8: [5, 'l_heel'], 11: [8, 'l_foot'], 1: [0, 'r_hip'], 4: [1, 'r_knee'],
    7: [4, 'r_heel'], 10: [7, 'r_foot'], 14: [9, 'l_collar'],
    17: [14, 'l_shoulder'], 19: [17, 'l_elbow'], 21: [19, 'l_wrist'],
    13: [9, 'r_collar'], 16: [13, 'r_shoulder'], 18: [16, 'r_elbow'],
    20: [18, 'r_wrist'],
}

NUM_JOINTS = 22


def build_ancestors():
    """Mirror of the PyTorch __init__ kinematic-tree walk (parent -> root)."""
    tree = {}
    for joint_id in sorted(SMPL_SKELETON.keys()):
        entry = SMPL_SKELETON[joint_id]
        parent_list = [entry[0]] if entry[0] > -1 else []
        tree[joint_id] = [parent_list, joint_id, entry[1]]

    def get_all_parents(parent_list, parent_id):
        if parent_id not in parent_list:
            parent_list.append(parent_id)
            for p in tree[parent_id][0]:
                get_all_parents(parent_list, p)

    ancestors = {}
    for joint_id in range(NUM_JOINTS):
        plist = []
        if len(tree[joint_id][0]) > 0:
            get_all_parents(plist, tree[joint_id][0][0])
        ancestors[joint_id] = plist
    return ancestors


def pack_level_params(ancestors, w1_all, b1_all, w2_all, b2_all,
                      *, hidden, hidden_spl, out_size, lane_pad=128):
    """Fold the kinematic tree into per-level gathered/scattered weights.

    Level L = number of ancestors of a joint; every ancestor of a level-L joint
    sits in a level < L, so processing levels in order is equivalent to the
    original per-joint sequential loop.
    """
    depth = {j: len(ancestors[j]) for j in range(NUM_JOINTS)}
    n_levels = max(depth.values()) + 1
    level_joints = [[j for j in range(NUM_JOINTS) if depth[j] == L]
                    for L in range(n_levels)]
    P = NUM_JOINTS * out_size
    LP = lane_pad
    assert max(len(lj) for lj in level_joints) * hidden_spl <= LP

    w1g = np.zeros((n_levels, hidden, LP), np.float32)   # hidden -> level cols
    b1g = np.zeros((n_levels, 1, LP), np.float32)
    ag = np.zeros((n_levels, P, LP), np.float32)         # pred   -> level cols
    w2s = np.zeros((n_levels, LP, P), np.float32)        # level  -> joint cols
    b2s = np.zeros((n_levels, 1, P), np.float32)

    for L, joints in enumerate(level_joints):
        for p, j in enumerate(joints):
            c0 = p * hidden_spl
            c1 = c0 + hidden_spl
            w1g[L, :, c0:c1] = w1_all[j, :hidden, :]
            b1g[L, 0, c0:c1] = b1_all[j, 0, :]
            for k, a in enumerate(ancestors[j]):
                r0 = hidden + k * out_size
                ag[L, a * out_size:(a + 1) * out_size, c0:c1] = \
                    w1_all[j, r0:r0 + out_size, :]
            w2s[L, c0:c1, j * out_size:(j + 1) * out_size] = w2_all[j]
            b2s[L, 0, j * out_size:(j + 1) * out_size] = b2_all[j, 0, :]

    return (jnp.asarray(w1g), jnp.asarray(b1g), jnp.asarray(ag),
            jnp.asarray(w2s), jnp.asarray(b2s), n_levels)


def spl_kernel(x_ref, w1g_ref, b1g_ref, ag_ref, w2s_ref, b2s_ref, out_ref,
               *, n_levels):
    """One row-tile per grid step; 8 kinematic levels unrolled in-kernel."""
    x = x_ref[...]                                        # (TILE, H)
    pred = jnp.zeros(out_ref.shape, jnp.float32)          # (TILE, 22*O), lane-dense

    for lvl in range(n_levels):                           # static unroll
        acc = jnp.dot(x, w1g_ref[lvl],
                      preferred_element_type=jnp.float32) + b1g_ref[lvl]
        if lvl > 0:
            # One matmul against ALL previous predictions; non-ancestor rows of
            # Ag are exactly zero, and pred starts at zero, so this equals the
            # original "concat parent predictions" contribution.
            acc = acc + jnp.dot(pred, ag_ref[lvl],
                                preferred_element_type=jnp.float32)
        h = jnp.maximum(acc, 0.0)                         # ReLU
        # Scatter this level's joint outputs into their lane-contiguous columns
        # (columns for joints of this level were zero before, so += is exact).
        pred = pred + jnp.dot(h, w2s_ref[lvl],
                              preferred_element_type=jnp.float32) + b2s_ref[lvl]

    out_ref[...] = pred


def _round_up(n, m):
    return -(-n // m) * m


def spl_forward(x, w1g, b1g, ag, w2s, b2s, n_levels,
                *, hidden, out_size, max_tile_bt=128):
    B, T, H = x.shape
    assert H == hidden
    BT = B * T
    P = NUM_JOINTS * out_size

    x2d = x.reshape(BT, H).astype(jnp.float32)
    tile_bt = min(max_tile_bt, _round_up(BT, 8))
    padded_bt = _round_up(BT, tile_bt)
    if padded_bt != BT:
        x2d = jnp.pad(x2d, ((0, padded_bt - BT), (0, 0)))

    kern = functools.partial(spl_kernel, n_levels=n_levels)

    out = pl.pallas_call(
        kern,
        out_shape=jax.ShapeDtypeStruct((padded_bt, P), jnp.float32),
        grid=(padded_bt // tile_bt,),
        in_specs=[
            pl.BlockSpec((tile_bt, H), lambda i: (i, 0)),
            # Packed weights: full-array blocks, constant index -> resident.
            pl.BlockSpec(w1g.shape, lambda i: (0, 0, 0)),
            pl.BlockSpec(b1g.shape, lambda i: (0, 0, 0)),
            pl.BlockSpec(ag.shape, lambda i: (0, 0, 0)),
            pl.BlockSpec(w2s.shape, lambda i: (0, 0, 0)),
            pl.BlockSpec(b2s.shape, lambda i: (0, 0, 0)),
        ],
        out_specs=pl.BlockSpec((tile_bt, P), lambda i: (i, 0)),
        compiler_params=pltpu.CompilerParams(
            dimension_semantics=("parallel",)),   # row tiles are independent
    )(x2d, w1g, b1g, ag, w2s, b2s)

    out = out[:BT]                                         # (BT, 22*O) lane-dense
    # (BT, 22*O) -> (B, T, 22*O) -> (B, 22*O, T)  (matches torch .permute(0,2,1))
    return out.reshape(B, T, P).transpose(0, 2, 1)


def reference_forward(x, ancestors, w1_all, b1_all, w2_all, b2_all,
                      *, hidden, out_size):
    """Pure-JAX mirror of the PyTorch forward."""
    preds = {}
    for j in range(NUM_JOINTS):
        parents = ancestors[j]
        cat = jnp.concatenate([x] + [preds[p] for p in parents], axis=2)
        n_in = hidden + out_size * len(parents)
        h = jnp.maximum(cat @ w1_all[j, :n_in, :] + b1_all[j, 0], 0.0)
        preds[j] = h @ w2_all[j] + b2_all[j, 0]
    out = jnp.concatenate([preds[k] for k in range(NUM_JOINTS)], axis=2)
    return out.transpose(0, 2, 1)


if __name__ == "__main__":
    # small synthetic shapes consistent with the module
    B, T = 2, 8
    hidden_size = 32          # per-joint conditioning features
    hidden_size_spl = 16
    output_size = 3           # e.g. angle-axis per joint

    ancestors = build_ancestors()
    max_par = max(len(v) for v in ancestors.values())           # 7
    max_in = hidden_size + output_size * max_par

    # deterministic per-joint MLP parameters (PyTorch-Linear-style uniform init)
    key = jax.random.PRNGKey(0)
    w1_np = np.zeros((NUM_JOINTS, max_in, hidden_size_spl), dtype=np.float32)
    b1_np = np.zeros((NUM_JOINTS, 1, hidden_size_spl), dtype=np.float32)
    w2_np = np.zeros((NUM_JOINTS, hidden_size_spl, output_size), dtype=np.float32)
    b2_np = np.zeros((NUM_JOINTS, 1, output_size), dtype=np.float32)
    for j in range(NUM_JOINTS):
        n_in = hidden_size + output_size * len(ancestors[j])
        key, k1, k2, k3, k4 = jax.random.split(key, 5)
        bound1 = 1.0 / np.sqrt(n_in)
        bound2 = 1.0 / np.sqrt(hidden_size_spl)
        w1_np[j, :n_in, :] = np.asarray(
            jax.random.uniform(k1, (n_in, hidden_size_spl),
                               minval=-bound1, maxval=bound1))
        b1_np[j, 0, :] = np.asarray(
            jax.random.uniform(k2, (hidden_size_spl,),
                               minval=-bound1, maxval=bound1))
        w2_np[j] = np.asarray(
            jax.random.uniform(k3, (hidden_size_spl, output_size),
                               minval=-bound2, maxval=bound2))
        b2_np[j, 0, :] = np.asarray(
            jax.random.uniform(k4, (output_size,),
                               minval=-bound2, maxval=bound2))

    # Fold the kinematic tree into per-level gathered/scattered weights.
    w1g, b1g, ag, w2s, b2s, n_levels = pack_level_params(
        ancestors, w1_np, b1_np, w2_np, b2_np,
        hidden=hidden_size, hidden_spl=hidden_size_spl, out_size=output_size)

    key, kx = jax.random.split(key)
    x = jax.random.normal(kx, (B, T, hidden_size), dtype=jnp.float32)

    y = spl_forward(x, w1g, b1g, ag, w2s, b2s, n_levels,
                    hidden=hidden_size, out_size=output_size)
    y = jax.block_until_ready(y)

    w1_all = jnp.asarray(w1_np)
    b1_all = jnp.asarray(b1_np)
    w2_all = jnp.asarray(w2_np)
    b2_all = jnp.asarray(b2_np)
    y_ref = reference_forward(x, ancestors, w1_all, b1_all, w2_all, b2_all,
                              hidden=hidden_size, out_size=output_size)
    y_ref = jax.block_until_ready(y_ref)

    assert y.shape == (B, NUM_JOINTS * output_size, T), y.shape
    np.testing.assert_allclose(np.asarray(y), np.asarray(y_ref),
                               rtol=1e-4, atol=1e-4)
    print("KERNEL_OK")
</pallas_src>

<mosaic_0001>
module attributes {stable_mosaic.version = 11 : i64} {
  func.func @spl_kernel(%arg0: i32, %arg1: memref<16x32xf32, #tpu.memory_space<vmem>>, %arg2: memref<8x32x128xf32, #tpu.memory_space<vmem>>, %arg3: memref<8x1x128xf32, #tpu.memory_space<vmem>>, %arg4: memref<8x66x128xf32, #tpu.memory_space<vmem>>, %arg5: memref<8x128x66xf32, #tpu.memory_space<vmem>>, %arg6: memref<8x1x66xf32, #tpu.memory_space<vmem>>, %arg7: memref<16x66xf32, #tpu.memory_space<vmem>>) attributes {dimension_semantics = [#tpu.dimension_semantics<parallel>], iteration_bounds = array<i64: 1>, scalar_prefetch = 0 : i64, scratch_operands = 0 : i64, tpu.core_type = #tpu.core_type<tc>, window_params = [{transform_indices = @transform_0, window_bounds = array<i64: 16, 32>}, {pipeline_mode = #tpu.pipeline_mode<synchronous>, transform_indices = @transform_1, window_bounds = array<i64: 8, 32, 128>}, {pipeline_mode = #tpu.pipeline_mode<synchronous>, transform_indices = @transform_2, window_bounds = array<i64: 8, 1, 128>}, {pipeline_mode = #tpu.pipeline_mode<synchronous>, transform_indices = @transform_3, window_bounds = array<i64: 8, 66, 128>}, {pipeline_mode = #tpu.pipeline_mode<synchronous>, transform_indices = @transform_4, window_bounds = array<i64: 8, 128, 66>}, {pipeline_mode = #tpu.pipeline_mode<synchronous>, transform_indices = @transform_5, window_bounds = array<i64: 8, 1, 66>}, {transform_indices = @transform_6, window_bounds = array<i64: 16, 66>}]} {
    %c0 = arith.constant 0 : index
    %c0_0 = arith.constant 0 : index
    %0 = vector.load %arg1[%c0, %c0_0] : memref<16x32xf32, #tpu.memory_space<vmem>>, vector<16x32xf32>
    %cst = arith.constant 0.000000e+00 : f32
    %1 = vector.broadcast %cst : f32 to vector<16x66xf32>
    %c0_1 = arith.constant 0 : index
    %c0_2 = arith.constant 0 : index
    %c0_3 = arith.constant 0 : index
    %2 = vector.load %arg2[%c0_1, %c0_2, %c0_3] : memref<8x32x128xf32, #tpu.memory_space<vmem>>, vector<1x32x128xf32>
    %3 = vector.shape_cast %2 : vector<1x32x128xf32> to vector<32x128xf32>
    %cst_4 = arith.constant dense<0.000000e+00> : vector<16x128xf32>
    %4 = tpu.matmul %0, %3, %cst_4 {dimension_numbers = #tpu.dot_dimension_numbers<[1], [0], [0], [1], [0, 0, 1, 1], [], []>} : vector<16x32xf32>, vector<32x128xf32>, vector<16x128xf32> -> vector<16x128xf32>
    %c0_5 = arith.constant 0 : index
    %c0_6 = arith.constant 0 : index
    %c0_7 = arith.constant 0 : index
    %5 = vector.load %arg3[%c0_5, %c0_6, %c0_7] : memref<8x1x128xf32, #tpu.memory_space<vmem>>, vector<1x1x128xf32>
    %6 = vector.shape_cast %5 : vector<1x1x128xf32> to vector<1x128xf32>
    %7 = vector.broadcast %6 : vector<1x128xf32> to vector<16x128xf32>
    %8 = arith.addf %4, %7 : vector<16x128xf32>
    %cst_8 = arith.constant 0.000000e+00 : f32
    %9 = vector.broadcast %cst_8 : f32 to vector<16x128xf32>
    %10 = arith.maximumf %8, %9 : vector<16x128xf32>
    %c0_9 = arith.constant 0 : index
    %c0_10 = arith.constant 0 : index
    %c0_11 = arith.constant 0 : index
    %11 = vector.load %arg5[%c0_9, %c0_10, %c0_11] : memref<8x128x66xf32, #tpu.memory_space<vmem>>, vector<1x128x66xf32>
    %12 = vector.shape_cast %11 : vector<1x128x66xf32> to vector<128x66xf32>
    %cst_12 = arith.constant dense<0.000000e+00> : vector<16x66xf32>
    %13 = tpu.matmul %10, %12, %cst_12 {dimension_numbers = #tpu.dot_dimension_numbers<[1], [0], [0], [1], [0, 0, 1, 1], [], []>} : vector<16x128xf32>, vector<128x66xf32>, vector<16x66xf32> -> vector<16x66xf32>
    %14 = arith.addf %1, %13 : vector<16x66xf32>
    %c0_13 = arith.constant 0 : index
    %c0_14 = arith.constant 0 : index
    %c0_15 = arith.constant 0 : index
    %15 = vector.load %arg6[%c0_13, %c0_14, %c0_15] : memref<8x1x66xf32, #tpu.memory_space<vmem>>, vector<1x1x66xf32>
    %16 = vector.shape_cast %15 : vector<1x1x66xf32> to vector<1x66xf32>
    %17 = vector.broadcast %16 : vector<1x66xf32> to vector<16x66xf32>
    %18 = arith.addf %14, %17 : vector<16x66xf32>
    %c1 = arith.constant 1 : index
    %c0_16 = arith.constant 0 : index
    %c0_17 = arith.constant 0 : index
    %19 = vector.load %arg2[%c1, %c0_16, %c0_17] : memref<8x32x128xf32, #tpu.memory_space<vmem>>, vector<1x32x128xf32>
    %20 = vector.shape_cast %19 : vector<1x32x128xf32> to vector<32x128xf32>
    %cst_18 = arith.constant dense<0.000000e+00> : vector<16x128xf32>
    %21 = tpu.matmul %0, %20, %cst_18 {dimension_numbers = #tpu.dot_dimension_numbers<[1], [0], [0], [1], [0, 0, 1, 1], [], []>} : vector<16x32xf32>, vector<32x128xf32>, vector<16x128xf32> -> vector<16x128xf32>
    %c1_19 = arith.constant 1 : index
    %c0_20 = arith.constant 0 : index
    %c0_21 = arith.constant 0 : index
    %22 = vector.load %arg3[%c1_19, %c0_20, %c0_21] : memref<8x1x128xf32, #tpu.memory_space<vmem>>, vector<1x1x128xf32>
    %23 = vector.shape_cast %22 : vector<1x1x128xf32> to vector<1x128xf32>
    %24 = vector.broadcast %23 : vector<1x128xf32> to vector<16x128xf32>
    %25 = arith.addf %21, %24 : vector<16x128xf32>
    %c1_22 = arith.constant 1 : index
    %c0_23 = arith.constant 0 : index
    %c0_24 = arith.constant 0 : index
    %26 = vector.load %arg4[%c1_22, %c0_23, %c0_24] : memref<8x66x128xf32, #tpu.memory_space<vmem>>, vector<1x66x128xf32>
    %27 = vector.shape_cast %26 : vector<1x66x128xf32> to vector<66x128xf32>
    %cst_25 = arith.constant dense<0.000000e+00> : vector<16x128xf32>
    %28 = tpu.matmul %18, %27, %cst_25 {dimension_numbers = #tpu.dot_dimension_numbers<[1], [0], [0], [1], [0, 0, 1, 1], [], []>} : vector<16x66xf32>, vector<66x128xf32>, vector<16x128xf32> -> vector<16x128xf32>
    %29 = arith.addf %25, %28 : vector<16x128xf32>
    %cst_26 = arith.constant 0.000000e+00 : f32
    %30 = vector.broadcast %cst_26 : f32 to vector<16x128xf32>
    %31 = arith.maximumf %29, %30 : vector<16x128xf32>
    %c1_27 = arith.constant 1 : index
    %c0_28 = arith.constant 0 : index
    %c0_29 = arith.constant 0 : index
    %32 = vector.load %arg5[%c1_27, %c0_28, %c0_29] : memref<8x128x66xf32, #tpu.memory_space<vmem>>, vector<1x128x66xf32>
    %33 = vector.shape_cast %32 : vector<1x128x66xf32> to vector<128x66xf32>
    %cst_30 = arith.constant dense<0.000000e+00> : vector<16x66xf32>
    %34 = tpu.matmul %31, %33, %cst_30 {dimension_numbers = #tpu.dot_dimension_numbers<[1], [0], [0], [1], [0, 0, 1, 1], [], []>} : vector<16x128xf32>, vector<128x66xf32>, vector<16x66xf32> -> vector<16x66xf32>
    %35 = arith.addf %18, %34 : vector<16x66xf32>
    %c1_31 = arith.constant 1 : index
    %c0_32 = arith.constant 0 : index
    %c0_33 = arith.constant 0 : index
    %36 = vector.load %arg6[%c1_31, %c0_32, %c0_33] : memref<8x1x66xf32, #tpu.memory_space<vmem>>, vector<1x1x66xf32>
    %37 = vector.shape_cast %36 : vector<1x1x66xf32> to vector<1x66xf32>
    %38 = vector.broadcast %37 : vector<1x66xf32> to vector<16x66xf32>
    %39 = arith.addf %35, %38 : vector<16x66xf32>
    %c2 = arith.constant 2 : index
    %c0_34 = arith.constant 0 : index
    %c0_35 = arith.constant 0 : index
    %40 = vector.load %arg2[%c2, %c0_34, %c0_35] : memref<8x32x128xf32, #tpu.memory_space<vmem>>, vector<1x32x128xf32>
    %41 = vector.shape_cast %40 : vector<1x32x128xf32> to vector<32x128xf32>
    %cst_36 = arith.constant dense<0.000000e+00> : vector<16x128xf32>
    %42 = tpu.matmul %0, %41, %cst_36 {dimension_numbers = #tpu.dot_dimension_numbers<[1], [0], [0], [1], [0, 0, 1, 1], [], []>} : vector<16x32xf32>, vector<32x128xf32>, vector<16x128xf32> -> vector<16x128xf32>
    %c2_37 = arith.constant 2 : index
    %c0_38 = arith.constant 0 : index
    %c0_39 = arith.constant 0 : index
    %43 = vector.load %arg3[%c2_37, %c0_38, %c0_39] : memref<8x1x128xf32, #tpu.memory_space<vmem>>, vector<1x1x128xf32>
    %44 = vector.shape_cast %43 : vector<1x1x128xf32> to vector<1x128xf32>
    %45 = vector.broadcast %44 : vector<1x128xf32> to vector<16x128xf32>
    %46 = arith.addf %42, %45 : vector<16x128xf32>
    %c2_40 = arith.constant 2 : index
    %c0_41 = arith.constant 0 : index
    %c0_42 = arith.constant 0 : index
    %47 = vector.load %arg4[%c2_40, %c0_41, %c0_42] : memref<8x66x128xf32, #tpu.memory_space<vmem>>, vector<1x66x128xf32>
    %48 = vector.shape_cast %47 : vector<1x66x128xf32> to vector<66x128xf32>
    %cst_43 = arith.constant dense<0.000000e+00> : vector<16x128xf32>
    %49 = tpu.matmul %39, %48, %cst_43 {dimension_numbers = #tpu.dot_dimension_numbers<[1], [0], [0], [1], [0, 0, 1, 1], [], []>} : vector<16x66xf32>, vector<66x128xf32>, vector<16x128xf32> -> vector<16x128xf32>
    %50 = arith.addf %46, %49 : vector<16x128xf32>
    %cst_44 = arith.constant 0.000000e+00 : f32
    %51 = vector.broadcast %cst_44 : f32 to vector<16x128xf32>
    %52 = arith.maximumf %50, %51 : vector<16x128xf32>
    %c2_45 = arith.constant 2 : index
    %c0_46 = arith.constant 0 : index
    %c0_47 = arith.constant 0 : index
    %53 = vector.load %arg5[%c2_45, %c0_46, %c0_47] : memref<8x128x66xf32, #tpu.memory_space<vmem>>, vector<1x128x66xf32>
    %54 = vector.shape_cast %53 : vector<1x128x66xf32> to vector<128x66xf32>
    %cst_48 = arith.constant dense<0.000000e+00> : vector<16x66xf32>
    %55 = tpu.matmul %52, %54, %cst_48 {dimension_numbers = #tpu.dot_dimension_numbers<[1], [0], [0], [1], [0, 0, 1, 1], [], []>} : vector<16x128xf32>, vector<128x66xf32>, vector<16x66xf32> -> vector<16x66xf32>
    %56 = arith.addf %39, %55 : vector<16x66xf32>
    %c2_49 = arith.constant 2 : index
    %c0_50 = arith.constant 0 : index
    %c0_51 = arith.constant 0 : index
    %57 = vector.load %arg6[%c2_49, %c0_50, %c0_51] : memref<8x1x66xf32, #tpu.memory_space<vmem>>, vector<1x1x66xf32>
    %58 = vector.shape_cast %57 : vector<1x1x66xf32> to vector<1x66xf32>
    %59 = vector.broadcast %58 : vector<1x66xf32> to vector<16x66xf32>
    %60 = arith.addf %56, %59 : vector<16x66xf32>
    %c3 = arith.constant 3 : index
    %c0_52 = arith.constant 0 : index
    %c0_53 = arith.constant 0 : index
    %61 = vector.load %arg2[%c3, %c0_52, %c0_53] : memref<8x32x128xf32, #tpu.memory_space<vmem>>, vector<1x32x128xf32>
    %62 = vector.shape_cast %61 : vector<1x32x128xf32> to vector<32x128xf32>
    %cst_54 = arith.constant dense<0.000000e+00> : vector<16x128xf32>
    %63 = tpu.matmul %0, %62, %cst_54 {dimension_numbers = #tpu.dot_dimension_numbers<[1], [0], [0], [1], [0, 0, 1, 1], [], []>} : vector<16x32xf32>, vector<32x128xf32>, vector<16x128xf32> -> vector<16x128xf32>
    %c3_55 = arith.constant 3 : index
    %c0_56 = arith.constant 0 : index
    %c0_57 = arith.constant 0 : index
    %64 = vector.load %arg3[%c3_55, %c0_56, %c0_57] : memref<8x1x128xf32, #tpu.memory_space<vmem>>, vector<1x1x128xf32>
    %65 = vector.shape_cast %64 : vector<1x1x128xf32> to vector<1x128xf32>
    %66 = vector.broadcast %65 : vector<1x128xf32> to vector<16x128xf32>
    %67 = arith.addf %63, %66 : vector<16x128xf32>
    %c3_58 = arith.constant 3 : index
    %c0_59 = arith.constant 0 : index
    %c0_60 = arith.constant 0 : index
    %68 = vector.load %arg4[%c3_58, %c0_59, %c0_60] : memref<8x66x128xf32, #tpu.memory_space<vmem>>, vector<1x66x128xf32>
    %69 = vector.shape_cast %68 : vector<1x66x128xf32> to vector<66x128xf32>
    %cst_61 = arith.constant dense<0.000000e+00> : vector<16x128xf32>
    %70 = tpu.matmul %60, %69, %cst_61 {dimension_numbers = #tpu.dot_dimension_numbers<[1], [0], [0], [1], [0, 0, 1, 1], [], []>} : vector<16x66xf32>, vector<66x128xf32>, vector<16x128xf32> -> vector<16x128xf32>
    %71 = arith.addf %67, %70 : vector<16x128xf32>
    %cst_62 = arith.constant 0.000000e+00 : f32
    %72 = vector.broadcast %cst_62 : f32 to vector<16x128xf32>
    %73 = arith.maximumf %71, %72 : vector<16x128xf32>
    %c3_63 = arith.constant 3 : index
    %c0_64 = arith.constant 0 : index
    %c0_65 = arith.constant 0 : index
    %74 = vector.load %arg5[%c3_63, %c0_64, %c0_65] : memref<8x128x66xf32, #tpu.memory_space<vmem>>, vector<1x128x66xf32>
    %75 = vector.shape_cast %74 : vector<1x128x66xf32> to vector<128x66xf32>
    %cst_66 = arith.constant dense<0.000000e+00> : vector<16x66xf32>
    %76 = tpu.matmul %73, %75, %cst_66 {dimension_numbers = #tpu.dot_dimension_numbers<[1], [0], [0], [1], [0, 0, 1, 1], [], []>} : vector<16x128xf32>, vector<128x66xf32>, vector<16x66xf32> -> vector<16x66xf32>
    %77 = arith.addf %60, %76 : vector<16x66xf32>
    %c3_67 = arith.constant 3 : index
    %c0_68 = arith.constant 0 : index
    %c0_69 = arith.constant 0 : index
    %78 = vector.load %arg6[%c3_67, %c0_68, %c0_69] : memref<8x1x66xf32, #tpu.memory_space<vmem>>, vector<1x1x66xf32>
    %79 = vector.shape_cast %78 : vector<1x1x66xf32> to vector<1x66xf32>
    %80 = vector.broadcast %79 : vector<1x66xf32> to vector<16x66xf32>
    %81 = arith.addf %77, %80 : vector<16x66xf32>
    %c4 = arith.constant 4 : index
    %c0_70 = arith.constant 0 : index
    %c0_71 = arith.constant 0 : index
    %82 = vector.load %arg2[%c4, %c0_70, %c0_71] : memref<8x32x128xf32, #tpu.memory_space<vmem>>, vector<1x32x128xf32>
    %83 = vector.shape_cast %82 : vector<1x32x128xf32> to vector<32x128xf32>
    %cst_72 = arith.constant dense<0.000000e+00> : vector<16x128xf32>
    %84 = tpu.matmul %0, %83, %cst_72 {dimension_numbers = #tpu.dot_dimension_numbers<[1], [0], [0], [1], [0, 0, 1, 1], [], []>} : vector<16x32xf32>, vector<32x128xf32>, vector<16x128xf32> -> vector<16x128xf32>
    %c4_73 = arith.constant 4 : index
    %c0_74 = arith.constant 0 : index
    %c0_75 = arith.constant 0 : index
    %85 = vector.load %arg3[%c4_73, %c0_74, %c0_75] : memref<8x1x128xf32, #tpu.memory_space<vmem>>, vector<1x1x128xf32>
    %86 = vector.shape_cast %85 : vector<1x1x128xf32> to vector<1x128xf32>
    %87 = vector.broadcast %86 : vector<1x128xf32> to vector<16x128xf32>
    %88 = arith.addf %84, %87 : vector<16x128xf32>
    %c4_76 = arith.constant 4 : index
    %c0_77 = arith.constant 0 : index
    %c0_78 = arith.constant 0 : index
    %89 = vector.load %arg4[%c4_76, %c0_77, %c0_78] : memref<8x66x128xf32, #tpu.memory_space<vmem>>, vector<1x66x128xf32>
    %90 = vector.shape_cast %89 : vector<1x66x128xf32> to vector<66x128xf32>
    %cst_79 = arith.constant dense<0.000000e+00> : vector<16x128xf32>
    %91 = tpu.matmul %81, %90, %cst_79 {dimension_numbers = #tpu.dot_dimension_numbers<[1], [0], [0], [1], [0, 0, 1, 1], [], []>} : vector<16x66xf32>, vector<66x128xf32>, vector<16x128xf32> -> vector<16x128xf32>
    %92 = arith.addf %88, %91 : vector<16x128xf32>
    %cst_80 = arith.constant 0.000000e+00 : f32
    %93 = vector.broadcast %cst_80 : f32 to vector<16x128xf32>
    %94 = arith.maximumf %92, %93 : vector<16x128xf32>
    %c4_81 = arith.constant 4 : index
    %c0_82 = arith.constant 0 : index
    %c0_83 = arith.constant 0 : index
    %95 = vector.load %arg5[%c4_81, %c0_82, %c0_83] : memref<8x128x66xf32, #tpu.memory_space<vmem>>, vector<1x128x66xf32>
    %96 = vector.shape_cast %95 : vector<1x128x66xf32> to vector<128x66xf32>
    %cst_84 = arith.constant dense<0.000000e+00> : vector<16x66xf32>
    %97 = tpu.matmul %94, %96, %cst_84 {dimension_numbers = #tpu.dot_dimension_numbers<[1], [0], [0], [1], [0, 0, 1, 1], [], []>} : vector<16x128xf32>, vector<128x66xf32>, vector<16x66xf32> -> vector<16x66xf32>
    %98 = arith.addf %81, %97 : vector<16x66xf32>
    %c4_85 = arith.constant 4 : index
    %c0_86 = arith.constant 0 : index
    %c0_87 = arith.constant 0 : index
    %99 = vector.load %arg6[%c4_85, %c0_86, %c0_87] : memref<8x1x66xf32, #tpu.memory_space<vmem>>, vector<1x1x66xf32>
    %100 = vector.shape_cast %99 : vector<1x1x66xf32> to vector<1x66xf32>
    %101 = vector.broadcast %100 : vector<1x66xf32> to vector<16x66xf32>
    %102 = arith.addf %98, %101 : vector<16x66xf32>
    %c5 = arith.constant 5 : index
    %c0_88 = arith.constant 0 : index
    %c0_89 = arith.constant 0 : index
    %103 = vector.load %arg2[%c5, %c0_88, %c0_89] : memref<8x32x128xf32, #tpu.memory_space<vmem>>, vector<1x32x128xf32>
    %104 = vector.shape_cast %103 : vector<1x32x128xf32> to vector<32x128xf32>
    %cst_90 = arith.constant dense<0.000000e+00> : vector<16x128xf32>
    %105 = tpu.matmul %0, %104, %cst_90 {dimension_numbers = #tpu.dot_dimension_numbers<[1], [0], [0], [1], [0, 0, 1, 1], [], []>} : vector<16x32xf32>, vector<32x128xf32>, vector<16x128xf32> -> vector<16x128xf32>
    %c5_91 = arith.constant 5 : index
    %c0_92 = arith.constant 0 : index
    %c0_93 = arith.constant 0 : index
    %106 = vector.load %arg3[%c5_91, %c0_92, %c0_93] : memref<8x1x128xf32, #tpu.memory_space<vmem>>, vector<1x1x128xf32>
    %107 = vector.shape_cast %106 : vector<1x1x128xf32> to vector<1x128xf32>
    %108 = vector.broadcast %107 : vector<1x128xf32> to vector<16x128xf32>
    %109 = arith.addf %105, %108 : vector<16x128xf32>
    %c5_94 = arith.constant 5 : index
    %c0_95 = arith.constant 0 : index
    %c0_96 = arith.constant 0 : index
    %110 = vector.load %arg4[%c5_94, %c0_95, %c0_96] : memref<8x66x128xf32, #tpu.memory_space<vmem>>, vector<1x66x128xf32>
    %111 = vector.shape_cast %110 : vector<1x66x128xf32> to vector<66x128xf32>
    %cst_97 = arith.constant dense<0.000000e+00> : vector<16x128xf32>
    %112 = tpu.matmul %102, %111, %cst_97 {dimension_numbers = #tpu.dot_dimension_numbers<[1], [0], [0], [1], [0, 0, 1, 1], [], []>} : vector<16x66xf32>, vector<66x128xf32>, vector<16x128xf32> -> vector<16x128xf32>
    %113 = arith.addf %109, %112 : vector<16x128xf32>
    %cst_98 = arith.constant 0.000000e+00 : f32
    %114 = vector.broadcast %cst_98 : f32 to vector<16x128xf32>
    %115 = arith.maximumf %113, %114 : vector<16x128xf32>
    %c5_99 = arith.constant 5 : index
    %c0_100 = arith.constant 0 : index
    %c0_101 = arith.constant 0 : index
    %116 = vector.load %arg5[%c5_99, %c0_100, %c0_101] : memref<8x128x66xf32, #tpu.memory_space<vmem>>, vector<1x128x66xf32>
    %117 = vector.shape_cast %116 : vector<1x128x66xf32> to vector<128x66xf32>
    %cst_102 = arith.constant dense<0.000000e+00> : vector<16x66xf32>
    %118 = tpu.matmul %115, %117, %cst_102 {dimension_numbers = #tpu.dot_dimension_numbers<[1], [0], [0], [1], [0, 0, 1, 1], [], []>} : vector<16x128xf32>, vector<128x66xf32>, vector<16x66xf32> -> vector<16x66xf32>
    %119 = arith.addf %102, %118 : vector<16x66xf32>
    %c5_103 = arith.constant 5 : index
    %c0_104 = arith.constant 0 : index
    %c0_105 = arith.constant 0 : index
    %120 = vector.load %arg6[%c5_103, %c0_104, %c0_105] : memref<8x1x66xf32, #tpu.memory_space<vmem>>, vector<1x1x66xf32>
    %121 = vector.shape_cast %120 : vector<1x1x66xf32> to vector<1x66xf32>
    %122 = vector.broadcast %121 : vector<1x66xf32> to vector<16x66xf32>
    %123 = arith.addf %119, %122 : vector<16x66xf32>
    %c6 = arith.constant 6 : index
    %c0_106 = arith.constant 0 : index
    %c0_107 = arith.constant 0 : index
    %124 = vector.load %arg2[%c6, %c0_106, %c0_107] : memref<8x32x128xf32, #tpu.memory_space<vmem>>, vector<1x32x128xf32>
    %125 = vector.shape_cast %124 : vector<1x32x128xf32> to vector<32x128xf32>
    %cst_108 = arith.constant dense<0.000000e+00> : vector<16x128xf32>
    %126 = tpu.matmul %0, %125, %cst_108 {dimension_numbers = #tpu.dot_dimension_numbers<[1], [0], [0], [1], [0, 0, 1, 1], [], []>} : vector<16x32xf32>, vector<32x128xf32>, vector<16x128xf32> -> vector<16x128xf32>
    %c6_109 = arith.constant 6 : index
    %c0_110 = arith.constant 0 : index
    %c0_111 = arith.constant 0 : index
    %127 = vector.load %arg3[%c6_109, %c0_110, %c0_111] : memref<8x1x128xf32, #tpu.memory_space<vmem>>, vector<1x1x128xf32>
    %128 = vector.shape_cast %127 : vector<1x1x128xf32> to vector<1x128xf32>
    %129 = vector.broadcast %128 : vector<1x128xf32> to vector<16x128xf32>
    %130 = arith.addf %126, %129 : vector<16x128xf32>
    %c6_112 = arith.constant 6 : index
    %c0_113 = arith.constant 0 : index
    %c0_114 = arith.constant 0 : index
    %131 = vector.load %arg4[%c6_112, %c0_113, %c0_114] : memref<8x66x128xf32, #tpu.memory_space<vmem>>, vector<1x66x128xf32>
    %132 = vector.shape_cast %131 : vector<1x66x128xf32> to vector<66x128xf32>
    %cst_115 = arith.constant dense<0.000000e+00> : vector<16x128xf32>
    %133 = tpu.matmul %123, %132, %cst_115 {dimension_numbers = #tpu.dot_dimension_numbers<[1], [0], [0], [1], [0, 0, 1, 1], [], []>} : vector<16x66xf32>, vector<66x128xf32>, vector<16x128xf32> -> vector<16x128xf32>
    %134 = arith.addf %130, %133 : vector<16x128xf32>
    %cst_116 = arith.constant 0.000000e+00 : f32
    %135 = vector.broadcast %cst_116 : f32 to vector<16x128xf32>
    %136 = arith.maximumf %134, %135 : vector<16x128xf32>
    %c6_117 = arith.constant 6 : index
    %c0_118 = arith.constant 0 : index
    %c0_119 = arith.constant 0 : index
    %137 = vector.load %arg5[%c6_117, %c0_118, %c0_119] : memref<8x128x66xf32, #tpu.memory_space<vmem>>, vector<1x128x66xf32>
    %138 = vector.shape_cast %137 : vector<1x128x66xf32> to vector<128x66xf32>
    %cst_120 = arith.constant dense<0.000000e+00> : vector<16x66xf32>
    %139 = tpu.matmul %136, %138, %cst_120 {dimension_numbers = #tpu.dot_dimension_numbers<[1], [0], [0], [1], [0, 0, 1, 1], [], []>} : vector<16x128xf32>, vector<128x66xf32>, vector<16x66xf32> -> vector<16x66xf32>
    %140 = arith.addf %123, %139 : vector<16x66xf32>
    %c6_121 = arith.constant 6 : index
    %c0_122 = arith.constant 0 : index
    %c0_123 = arith.constant 0 : index
    %141 = vector.load %arg6[%c6_121, %c0_122, %c0_123] : memref<8x1x66xf32, #tpu.memory_space<vmem>>, vector<1x1x66xf32>
    %142 = vector.shape_cast %141 : vector<1x1x66xf32> to vector<1x66xf32>
    %143 = vector.broadcast %142 : vector<1x66xf32> to vector<16x66xf32>
    %144 = arith.addf %140, %143 : vector<16x66xf32>
    %c7 = arith.constant 7 : index
    %c0_124 = arith.constant 0 : index
    %c0_125 = arith.constant 0 : index
    %145 = vector.load %arg2[%c7, %c0_124, %c0_125] : memref<8x32x128xf32, #tpu.memory_space<vmem>>, vector<1x32x128xf32>
    %146 = vector.shape_cast %145 : vector<1x32x128xf32> to vector<32x128xf32>
    %cst_126 = arith.constant dense<0.000000e+00> : vector<16x128xf32>
    %147 = tpu.matmul %0, %146, %cst_126 {dimension_numbers = #tpu.dot_dimension_numbers<[1], [0], [0], [1], [0, 0, 1, 1], [], []>} : vector<16x32xf32>, vector<32x128xf32>, vector<16x128xf32> -> vector<16x128xf32>
    %c7_127 = arith.constant 7 : index
    %c0_128 = arith.constant 0 : index
    %c0_129 = arith.constant 0 : index
    %148 = vector.load %arg3[%c7_127, %c0_128, %c0_129] : memref<8x1x128xf32, #tpu.memory_space<vmem>>, vector<1x1x128xf32>
    %149 = vector.shape_cast %148 : vector<1x1x128xf32> to vector<1x128xf32>
    %150 = vector.broadcast %149 : vector<1x128xf32> to vector<16x128xf32>
    %151 = arith.addf %147, %150 : vector<16x128xf32>
    %c7_130 = arith.constant 7 : index
    %c0_131 = arith.constant 0 : index
    %c0_132 = arith.constant 0 : index
    %152 = vector.load %arg4[%c7_130, %c0_131, %c0_132] : memref<8x66x128xf32, #tpu.memory_space<vmem>>, vector<1x66x128xf32>
    %153 = vector.shape_cast %152 : vector<1x66x128xf32> to vector<66x128xf32>
    %cst_133 = arith.constant dense<0.000000e+00> : vector<16x128xf32>
    %154 = tpu.matmul %144, %153, %cst_133 {dimension_numbers = #tpu.dot_dimension_numbers<[1], [0], [0], [1], [0, 0, 1, 1], [], []>} : vector<16x66xf32>, vector<66x128xf32>, vector<16x128xf32> -> vector<16x128xf32>
    %155 = arith.addf %151, %154 : vector<16x128xf32>
    %cst_134 = arith.constant 0.000000e+00 : f32
    %156 = vector.broadcast %cst_134 : f32 to vector<16x128xf32>
    %157 = arith.maximumf %155, %156 : vector<16x128xf32>
    %c7_135 = arith.constant 7 : index
    %c0_136 = arith.constant 0 : index
    %c0_137 = arith.constant 0 : index
    %158 = vector.load %arg5[%c7_135, %c0_136, %c0_137] : memref<8x128x66xf32, #tpu.memory_space<vmem>>, vector<1x128x66xf32>
    %159 = vector.shape_cast %158 : vector<1x128x66xf32> to vector<128x66xf32>
    %cst_138 = arith.constant dense<0.000000e+00> : vector<16x66xf32>
    %160 = tpu.matmul %157, %159, %cst_138 {dimension_numbers = #tpu.dot_dimension_numbers<[1], [0], [0], [1], [0, 0, 1, 1], [], []>} : vector<16x128xf32>, vector<128x66xf32>, vector<16x66xf32> -> vector<16x66xf32>
    %161 = arith.addf %144, %160 : vector<16x66xf32>
    %c7_139 = arith.constant 7 : index
    %c0_140 = arith.constant 0 : index
    %c0_141 = arith.constant 0 : index
    %162 = vector.load %arg6[%c7_139, %c0_140, %c0_141] : memref<8x1x66xf32, #tpu.memory_space<vmem>>, vector<1x1x66xf32>
    %163 = vector.shape_cast %162 : vector<1x1x66xf32> to vector<1x66xf32>
    %164 = vector.broadcast %163 : vector<1x66xf32> to vector<16x66xf32>
    %165 = arith.addf %161, %164 : vector<16x66xf32>
    %c0_142 = arith.constant 0 : index
    %c0_143 = arith.constant 0 : index
    %166 = vector.load %arg7[%c0_142, %c0_143] : memref<16x66xf32, #tpu.memory_space<vmem>>, vector<16x66xf32>
    tpu.vector_store %arg7[%c0_142, %c0_143], %165 {strides = array<i32>} : memref<16x66xf32, #tpu.memory_space<vmem>>, vector<16x66xf32>,
    return
  }
  func.func @transform_0(%arg0: i32) -> (i32, i32) {
    %c0_i32 = arith.constant 0 : i32
    %c0_i32_0 = arith.constant 0 : i32
    return %arg0, %c0_i32 : i32, i32
  }
  func.func @transform_1(%arg0: i32) -> (i32, i32, i32) {
    %c0_i32 = arith.constant 0 : i32
    %c0_i32_0 = arith.constant 0 : i32
    %c0_i32_1 = arith.constant 0 : i32
    %c0_i32_2 = arith.constant 0 : i32
    return %c0_i32, %c0_i32_0, %c0_i32_1 : i32, i32, i32
  }
  func.func @transform_2(%arg0: i32) -> (i32, i32, i32) {
    %c0_i32 = arith.constant 0 : i32
    %c0_i32_0 = arith.constant 0 : i32
    %c0_i32_1 = arith.constant 0 : i32
    %c0_i32_2 = arith.constant 0 : i32
    return %c0_i32, %c0_i32_0, %c0_i32_1 : i32, i32, i32
  }
  func.func @transform_3(%arg0: i32) -> (i32, i32, i32) {
    %c0_i32 = arith.constant 0 : i32
    %c0_i32_0 = arith.constant 0 : i32
    %c0_i32_1 = arith.constant 0 : i32
    %c0_i32_2 = arith.constant 0 : i32
    return %c0_i32, %c0_i32_0, %c0_i32_1 : i32, i32, i32
  }
  func.func @transform_4(%arg0: i32) -> (i32, i32, i32) {
    %c0_i32 = arith.constant 0 : i32
    %c0_i32_0 = arith.constant 0 : i32
    %c0_i32_1 = arith.constant 0 : i32
    %c0_i32_2 = arith.constant 0 : i32
    return %c0_i32, %c0_i32_0, %c0_i32_1 : i32, i32, i32
  }
  func.func @transform_5(%arg0: i32) -> (i32, i32, i32) {
    %c0_i32 = arith.constant 0 : i32
    %c0_i32_0 = arith.constant 0 : i32
    %c0_i32_1 = arith.constant 0 : i32
    %c0_i32_2 = arith.constant 0 : i32
    return %c0_i32, %c0_i32_0, %c0_i32_1 : i32, i32, i32
  }
  func.func @transform_6(%arg0: i32) -> (i32, i32) {
    %c0_i32 = arith.constant 0 : i32
    %c0_i32_0 = arith.constant 0 : i32
    return %arg0, %c0_i32 : i32, i32
  }
}

</mosaic_0001>

<llo_original>
// kernel: tpu_custom_call.1
$region0: #{tpu_custom_call.1}
  #allocation0 [shape = 'u32[]', space=smem, size = 0x4, offset = 0x4, fixed_abs, tag = 'smem constant byte address 0x4 - core index']
  #allocation1 [shape = 'u32[144,128]{1,0:T(1,128)}', space=vmem, size = 0x12000, scoped, tag = 'internal scratch']
  %s0 = inlined_call_operand.vmem [shape: f32[16,32], index: 0, kind: input, shape index: {}]
  %s1 = inlined_call_operand.vmem [shape: f32[8,32,128], index: 1, kind: input, shape index: {}]
  %s2 = inlined_call_operand.vmem [shape: f32[8,1,128], index: 2, kind: input, shape index: {}]
  %s3 = inlined_call_operand.vmem [shape: f32[8,66,128], index: 3, kind: input, shape index: {}]
  %s4 = inlined_call_operand.vmem [shape: f32[8,128,66], index: 4, kind: input, shape index: {}]
  %s5 = inlined_call_operand.vmem [shape: f32[8,1,66], index: 5, kind: input, shape index: {}]
  %s6 = inlined_call_operand.hbm [shape: f32[16,66], index: 6, kind: output, shape index: {}]
  %s7 = sld [smem:[#allocation0]]
  $region34: #{tpu_custom_call.1} parent=0
    _
  %s9 = ssub.s32 1, %s7
  %s10 = scalar_select 0, %s9, %s7
  $region1: #{tpu_custom_call.1} parent=0
    #allocation2 [shape = 'u8[8192]{0}', space=vmem, size = 0x2000, scoped, tag = 'output window, operand 0, single buffered']
    #allocation3 [shape = 's32[1]{0}', space=sflag, size = 0x4, scoped, tag = 'scoped memory for tpu_custom_call.1']
    %11 = vsyncpa [#allocation3], 0
    // Predicated region
    $region2: #{tpu_custom_call.1} parent=1 // pred_check
      _
    $region3: #{tpu_custom_call.1} parent=1 // pred_check_branch
      %13 = sbr.rel (0) target = $region5
    $region4: #{tpu_custom_call.1} parent=1 // pred_region
      _
    $region5: #{tpu_custom_call.1} parent=1 // pred_fallthru
      _
    // Predicated region
    $region6: #{tpu_custom_call.1} parent=1 // pred_check
      _
    $region7: #{tpu_custom_call.1} parent=1 // pred_check_branch
      %15 = sbr.rel (0) target = $region9
    $region8: #{tpu_custom_call.1} parent=1 // pred_region
      _
    $region9: #{tpu_custom_call.1} parent=1 // pred_fallthru
      _
    // Predicated region
    $region10: #{tpu_custom_call.1} parent=1 // pred_check
      _
    $region11: #{tpu_custom_call.1} parent=1 // pred_check_branch
      %17 = sbr.rel (0) target = $region13
    $region12: #{tpu_custom_call.1} parent=1 // pred_region
      _
    $region13: #{tpu_custom_call.1} parent=1 // pred_fallthru
      _
    // Predicated region
    $region14: #{tpu_custom_call.1} parent=1 // pred_check
      _
    $region15: #{tpu_custom_call.1} parent=1 // pred_check_branch
      %19 = sbr.rel (0) target = $region17
    $region16: #{tpu_custom_call.1} parent=1 // pred_region
      _
    $region17: #{tpu_custom_call.1} parent=1 // pred_fallthru
      _
    // Predicated region
    $region18: #{tpu_custom_call.1} parent=1 // pred_check
      _
    $region19: #{tpu_custom_call.1} parent=1 // pred_check_branch
      %21 = sbr.rel (0) target = $region21
    $region20: #{tpu_custom_call.1} parent=1 // pred_region
      _
    $region21: #{tpu_custom_call.1} parent=1 // pred_fallthru
      _
    // Predicated region
    $region22: #{tpu_custom_call.1} parent=1 // pred_check
      _
    $region23: #{tpu_custom_call.1} parent=1 // pred_check_branch
      %23 = sbr.rel (0) target = $region25
    $region24: #{tpu_custom_call.1} parent=1 // pred_region
      _
    $region25: #{tpu_custom_call.1} parent=1 // pred_fallthru
      _
    %v24 = vld [vmem:[%s0] sm:$0xff]
    %v25 = vld [vmem:[%s0 + $0x8] sm:$0xff]
    %v26 = vld [vmem:[%s1] sm:$0xff]
    %v27 = vld [vmem:[%s1 + $0x8] sm:$0xff]
    %v28 = vld [vmem:[%s1 + $0x10] sm:$0xff]
    %v29 = vld [vmem:[%s1 + $0x18] sm:$0xff]
    %v30 = vld [vmem:[%s2] sm:$0x1]
    %v32 = vlaneseq
    %v33 = vshrl.u32 %v32, 7
    %v34 = vsub.s32 0, %v33
    %v35 = vrot.slane %v30, %v34
    %vm37 = vcmask 261120
    %v39 = vsel %vm37, %v24, 0
    %v42 = vsel %vm37, %v25, 0
    %44 = vmatprep.subr.mxu0 0.0
    %45 = vmatpush1.msra.mxu0 %v26
    %46 = vmatprep.subr.mxu0 0.0
    %47 = vmatpush1.msra.mxu0 %v27
    %48 = vmatprep.subr.mxu0 0.0
    %49 = vmatpush1.msra.mxu0 %v28
    %50 = vmatprep.subr.mxu0 0.0
    %51 = vmatpush1.msra.mxu0 %v29
    %52 = vmatprep.subr.mxu0 0.0
    %53 = vmatpush1.msra.mxu0 0.0
    %54 = vmatprep.subr.mxu0 0.0
    %55 = vmatpush1.msra.mxu0 0.0
    %56 = vmatprep.subr.mxu0 0.0
    %57 = vmatpush1.msra.mxu0 0.0
    %58 = vmatprep.subr.mxu0 0.0
    %59 = vmatpush1.msra.mxu0 0.0
    %60 = vmatprep.subr.mxu0 0.0
    %61 = vmatpush1.msra.mxu0 0.0
    %62 = vmatprep.subr.mxu0 0.0
    %63 = vmatpush1.msra.mxu0 0.0
    %64 = vmatprep.subr.mxu0 0.0
    %65 = vmatpush1.msra.mxu0 0.0
    %66 = vmatprep.subr.mxu0 0.0
    %67 = vmatpush1.msra.mxu0 0.0
    %68 = vmatprep.subr.mxu0 0.0
    %69 = vmatpush1.msra.mxu0 0.0
    %70 = vmatprep.subr.mxu0 0.0
    %71 = vmatpush1.msra.mxu0 0.0
    %72 = vmatprep.subr.mxu0 0.0
    %73 = vmatpush1.msra.mxu0 0.0
    %74 = vmatprep.subr.mxu0 0.0
    %75 = vmatpush1.msra.mxu0 0.0
    %76 = vmatprep.subr.mxu0 0.0
    %77 = vmatpush1.msra.mxu0 0.0
    %78 = vmatprep.subr.mxu0 0.0
    %79 = vmatpush1.msra.mxu0 0.0
    %80 = vmatprep.subr.mxu0 0.0
    %81 = vmatpush1.msra.mxu0 0.0
    %82 = vmatprep.subr.mxu0 0.0
    %83 = vmatpush1.msra.mxu0 0.0
    %84 = vmatprep.subr.mxu0 0.0
    %85 = vmatpush1.msra.mxu0 0.0
    %86 = vmatprep.subr.mxu0 0.0
    %87 = vmatpush1.msra.mxu0 0.0
    %88 = vmatprep.subr.mxu0 0.0
    %89 = vmatpush1.msra.mxu0 0.0
    %90 = vmatprep.subr.mxu0 0.0
    %91 = vmatpush1.msra.mxu0 0.0
    %92 = vmatprep.subr.mxu0 0.0
    %93 = vmatpush1.msra.mxu0 0.0
    %94 = vmatprep.subr.mxu0 0.0
    %95 = vmatpush1.msra.mxu0 0.0
    %96 = vmatprep.subr.mxu0 0.0
    %97 = vmatpush1.msra.mxu0 0.0
    %98 = vmatprep.subr.mxu0 0.0
    %99 = vmatpush1.msra.mxu0 0.0
    %100 = vmatprep.subr.mxu0 0.0
    %101 = vmatpush1.msra.mxu0 0.0
    %102 = vmatprep.subr.mxu0 0.0
    %103 = vmatpush1.msra.mxu0 0.0
    %104 = vmatprep.subr.mxu0 0.0
    %105 = vmatpush1.msra.mxu0 0.0
    %106 = vmatprep.subr.mxu0 0.0
    %107 = vmatpush1.msra.mxu0 0.0
    %108 = vmatprep.mubr.f32.mxu0 0.0
    %109 = vmatmul.mubr.f32.gmra.mrb[0].mxu0 %v39
    %v110 = vpop.f32.mrb[0].mxu0
    %v111 = vadd.f32 %v35, %v110
    %v112 = vpop.f32.mrb[0].mxu0
    %113 = vmatprep.mubr.f32.mxu0 0.0
    %114 = vmatmul.mubr.f32.gmra.mrb[0].mxu0 %v42
    %v115 = vpop.f32.mrb[0].mxu0
    %v116 = vadd.f32 %v35, %v115
    %v117 = vpop.f32.mrb[0].mxu0
    %118 = vdwg.mxu0
    %v119 = vmax.f32 %v111, 0.0
    %v120 = vmax.f32 %v116, 0.0
    %v121 = vld [vmem:[%s4] sm:$0xff]
    %v122 = vld [vmem:[%s4 + $0x8] sm:$0xff]
    %v123 = vld [vmem:[%s4 + $0x10] sm:$0xff]
    %v124 = vld [vmem:[%s4 + $0x18] sm:$0xff]
    %v125 = vld [vmem:[%s4 + $0x20] sm:$0xff]
    %v126 = vld [vmem:[%s4 + $0x28] sm:$0xff]
    %v127 = vld [vmem:[%s4 + $0x30] sm:$0xff]
    %v128 = vld [vmem:[%s4 + $0x38] sm:$0xff]
    %v129 = vld [vmem:[%s4 + $0x40] sm:$0xff]
    %v130 = vld [vmem:[%s4 + $0x48] sm:$0xff]
    %v131 = vld [vmem:[%s4 + $0x50] sm:$0xff]
    %v132 = vld [vmem:[%s4 + $0x58] sm:$0xff]
    %v133 = vld [vmem:[%s4 + $0x60] sm:$0xff]
    %v134 = vld [vmem:[%s4 + $0x68] sm:$0xff]
    %v135 = vld [vmem:[%s4 + $0x70] sm:$0xff]
    %v136 = vld [vmem:[%s4 + $0x78] sm:$0xff]
    %v137 = vld [vmem:[%s5] sm:$0x1]
    %v139 = vlaneseq
    %v140 = vshrl.u32 %v139, 7
    %v141 = vsub.s32 0, %v140
    %v142 = vrot.slane %v137, %v141
    %144 = vmatprep.subr.mxu0 0.0
    %145 = vmatpush1.msra.mxu0 %v121
    %146 = vmatprep.subr.mxu0 0.0
    %147 = vmatpush1.msra.mxu0 %v122
    %148 = vmatprep.subr.mxu0 0.0
    %149 = vmatpush1.msra.mxu0 %v123
    %150 = vmatprep.subr.mxu0 0.0
    %151 = vmatpush1.msra.mxu0 %v124
    %152 = vmatprep.subr.mxu0 0.0
    %153 = vmatpush1.msra.mxu0 %v125
    %154 = vmatprep.subr.mxu0 0.0
    %155 = vmatpush1.msra.mxu0 %v126
    %156 = vmatprep.subr.mxu0 0.0
    %157 = vmatpush1.msra.mxu0 %v127
    %158 = vmatprep.subr.mxu0 0.0
    %159 = vmatpush1.msra.mxu0 %v128
    %160 = vmatprep.subr.mxu0 0.0
    %161 = vmatpush1.msra.mxu0 %v129
    %162 = vmatprep.subr.mxu0 0.0
    %163 = vmatpush1.msra.mxu0 %v130
    %164 = vmatprep.subr.mxu0 0.0
    %165 = vmatpush1.msra.mxu0 %v131
    %166 = vmatprep.subr.mxu0 0.0
    %167 = vmatpush1.msra.mxu0 %v132
    %168 = vmatprep.subr.mxu0 0.0
    %169 = vmatpush1.msra.mxu0 %v133
    %170 = vmatprep.subr.mxu0 0.0
    %171 = vmatpush1.msra.mxu0 %v134
    %172 = vmatprep.subr.mxu0 0.0
    %173 = vmatpush1.msra.mxu0 %v135
    %174 = vmatprep.subr.mxu0 0.0
    %175 = vmatpush1.msra.mxu0 %v136
    %176 = vmatprep.subr.mxu0 0.0
    %177 = vmatpush1.msra.mxu0 0.0
    %178 = vmatprep.subr.mxu0 0.0
    %179 = vmatpush1.msra.mxu0 0.0
    %180 = vmatprep.subr.mxu0 0.0
    %181 = vmatpush1.msra.mxu0 0.0
    %182 = vmatprep.subr.mxu0 0.0
    %183 = vmatpush1.msra.mxu0 0.0
    %184 = vmatprep.subr.mxu0 0.0
    %185 = vmatpush1.msra.mxu0 0.0
    %186 = vmatprep.subr.mxu0 0.0
    %187 = vmatpush1.msra.mxu0 0.0
    %188 = vmatprep.subr.mxu0 0.0
    %189 = vmatpush1.msra.mxu0 0.0
    %190 = vmatprep.subr.mxu0 0.0
    %191 = vmatpush1.msra.mxu0 0.0
    %192 = vmatprep.subr.mxu0 0.0
    %193 = vmatpush1.msra.mxu0 0.0
    %194 = vmatprep.subr.mxu0 0.0
    %195 = vmatpush1.msra.mxu0 0.0
    %196 = vmatprep.subr.mxu0 0.0
    %197 = vmatpush1.msra.mxu0 0.0
    %198 = vmatprep.subr.mxu0 0.0
    %199 = vmatpush1.msra.mxu0 0.0
    %200 = vmatprep.subr.mxu0 0.0
    %201 = vmatpush1.msra.mxu0 0.0
    %202 = vmatprep.subr.mxu0 0.0
    %203 = vmatpush1.msra.mxu0 0.0
    %204 = vmatprep.subr.mxu0 0.0
    %205 = vmatpush1.msra.mxu0 0.0
    %206 = vmatprep.subr.mxu0 0.0
    %207 = vmatpush1.msra.mxu0 0.0
    %208 = vmatprep.mubr.f32.mxu0 0.0
    %209 = vmatmul.mubr.f32.gmra.mrb[0].mxu0 %v119
    %v210 = vpop.f32.mrb[0].mxu0
    %v211 = vadd.f32 %v142, %v210
    %v212 = vpop.f32.mrb[0].mxu0
    %213 = vmatprep.mubr.f32.mxu0 0.0
    %214 = vmatmul.mubr.f32.gmra.mrb[0].mxu0 %v120
    %v215 = vpop.f32.mrb[0].mxu0
    %v216 = vadd.f32 %v142, %v215
    %v217 = vpop.f32.mrb[0].mxu0
    %218 = vdwg.mxu0
    %s219 = scalar_lea.vmem %s1, 32
    %v220 = vld [vmem:[%s219] sm:$0xff]
    %v221 = vld [vmem:[%s219 + $0x8] sm:$0xff]
    %v222 = vld [vmem:[%s219 + $0x10] sm:$0xff]
    %v223 = vld [vmem:[%s219 + $0x18] sm:$0xff]
    %s224 = scalar_lea.vmem %s2, 1
    %v225 = vld [vmem:[%s224] sm:$0x1]
    %v227 = vlaneseq
    %v228 = vshrl.u32 %v227, 7
    %v229 = vsub.s32 0, %v228
    %v230 = vrot.slane %v225, %v229
    %232 = vmatprep.subr.mxu0 0.0
    %233 = vmatpush1.msra.mxu0 %v220
    %234 = vmatprep.subr.mxu0 0.0
    %235 = vmatpush1.msra.mxu0 %v221
    %236 = vmatprep.subr.mxu0 0.0
    %237 = vmatpush1.msra.mxu0 %v222
    %238 = vmatprep.subr.mxu0 0.0
    %239 = vmatpush1.msra.mxu0 %v223
    %240 = vmatprep.subr.mxu0 0.0
    %241 = vmatpush1.msra.mxu0 0.0
    %242 = vmatprep.subr.mxu0 0.0
    %243 = vmatpush1.msra.mxu0 0.0
    %244 = vmatprep.subr.mxu0 0.0
    %245 = vmatpush1.msra.mxu0 0.0
    %246 = vmatprep.subr.mxu0 0.0
    %247 = vmatpush1.msra.mxu0 0.0
    %248 = vmatprep.subr.mxu0 0.0
    %249 = vmatpush1.msra.mxu0 0.0
    %250 = vmatprep.subr.mxu0 0.0
    %251 = vmatpush1.msra.mxu0 0.0
    %252 = vmatprep.subr.mxu0 0.0
    %253 = vmatpush1.msra.mxu0 0.0
    %254 = vmatprep.subr.mxu0 0.0
    %255 = vmatpush1.msra.mxu0 0.0
    %256 = vmatprep.subr.mxu0 0.0
    %257 = vmatpush1.msra.mxu0 0.0
    %258 = vmatprep.subr.mxu0 0.0
    %259 = vmatpush1.msra.mxu0 0.0
    %260 = vmatprep.subr.mxu0 0.0
    %261 = vmatpush1.msra.mxu0 0.0
    %262 = vmatprep.subr.mxu0 0.0
    %263 = vmatpush1.msra.mxu0 0.0
    %264 = vmatprep.subr.mxu0 0.0
    %265 = vmatpush1.msra.mxu0 0.0
    %266 = vmatprep.subr.mxu0 0.0
    %267 = vmatpush1.msra.mxu0 0.0
    %268 = vmatprep.subr.mxu0 0.0
    %269 = vmatpush1.msra.mxu0 0.0
    %270 = vmatprep.subr.mxu0 0.0
    %271 = vmatpush1.msra.mxu0 0.0
    %272 = vmatprep.subr.mxu0 0.0
    %273 = vmatpush1.msra.mxu0 0.0
    %274 = vmatprep.subr.mxu0 0.0
    %275 = vmatpush1.msra.mxu0 0.0
    %276 = vmatprep.subr.mxu0 0.0
    %277 = vmatpush1.msra.mxu0 0.0
    %278 = vmatprep.subr.mxu0 0.0
    %279 = vmatpush1.msra.mxu0 0.0
    %280 = vmatprep.subr.mxu0 0.0
    %281 = vmatpush1.msra.mxu0 0.0
    %282 = vmatprep.subr.mxu0 0.0
    %283 = vmatpush1.msra.mxu0 0.0
    %284 = vmatprep.subr.mxu0 0.0
    %285 = vmatpush1.msra.mxu0 0.0
    %286 = vmatprep.subr.mxu0 0.0
    %287 = vmatpush1.msra.mxu0 0.0
    %288 = vmatprep.subr.mxu0 0.0
    %289 = vmatpush1.msra.mxu0 0.0
    %290 = vmatprep.subr.mxu0 0.0
    %291 = vmatpush1.msra.mxu0 0.0
    %292 = vmatprep.subr.mxu0 0.0
    %293 = vmatpush1.msra.mxu0 0.0
    %294 = vmatprep.subr.mxu0 0.0
    %295 = vmatpush1.msra.mxu0 0.0
    %296 = vmatprep.mubr.f32.mxu0 0.0
    %297 = vmatmul.mubr.f32.gmra.mrb[0].mxu0 %v39
    %v298 = vpop.f32.mrb[0].mxu0
    %v299 = vadd.f32 %v230, %v298
    %v300 = vpop.f32.mrb[0].mxu0
    %301 = vmatprep.mubr.f32.mxu0 0.0
    %302 = vmatmul.mubr.f32.gmra.mrb[0].mxu0 %v42
    %v303 = vpop.f32.mrb[0].mxu0
    %v304 = vadd.f32 %v230, %v303
    %v305 = vpop.f32.mrb[0].mxu0
    %306 = vdwg.mxu0
    %s307 = scalar_lea.vmem %s3, 72
    %v308 = vld [vmem:[%s307] sm:$0xff]
    %v309 = vld [vmem:[%s307 + $0x8] sm:$0xff]
    %v310 = vld [vmem:[%s307 + $0x10] sm:$0xff]
    %v311 = vld [vmem:[%s307 + $0x18] sm:$0xff]
    %v312 = vld [vmem:[%s307 + $0x20] sm:$0xff]
    %v313 = vld [vmem:[%s307 + $0x28] sm:$0xff]
    %v314 = vld [vmem:[%s307 + $0x30] sm:$0xff]
    %v315 = vld [vmem:[%s307 + $0x38] sm:$0xff]
    %v316 = vld [vmem:[%s307 + $0x40] sm:$0x3]
    %vm317 = vcmask 539648
    %v319 = vsel %vm317, %v211, 0
    %v322 = vsel %vm317, %v216, 0
    %vm324 = vcmask 1041408
    %v326 = vsel %vm324, %v316, 0
    %328 = vmatprep.subr.mxu0 0.0
    %329 = vmatpush1.msra.mxu0 %v308
    %330 = vmatprep.subr.mxu0 0.0
    %331 = vmatpush1.msra.mxu0 %v309
    %332 = vmatprep.subr.mxu0 0.0
    %333 = vmatpush1.msra.mxu0 %v310
    %334 = vmatprep.subr.mxu0 0.0
    %335 = vmatpush1.msra.mxu0 %v311
    %336 = vmatprep.subr.mxu0 0.0
    %337 = vmatpush1.msra.mxu0 %v312
    %338 = vmatprep.subr.mxu0 0.0
    %339 = vmatpush1.msra.mxu0 %v313
    %340 = vmatprep.subr.mxu0 0.0
    %341 = vmatpush1.msra.mxu0 %v314
    %342 = vmatprep.subr.mxu0 0.0
    %343 = vmatpush1.msra.mxu0 %v315
    %344 = vmatprep.subr.mxu0 0.0
    %345 = vmatpush1.msra.mxu0 %v326
    %346 = vmatprep.subr.mxu0 0.0
    %347 = vmatpush1.msra.mxu0 0.0
    %348 = vmatprep.subr.mxu0 0.0
    %349 = vmatpush1.msra.mxu0 0.0
    %350 = vmatprep.subr.mxu0 0.0
    %351 = vmatpush1.msra.mxu0 0.0
    %352 = vmatprep.subr.mxu0 0.0
    %353 = vmatpush1.msra.mxu0 0.0
    %354 = vmatprep.subr.mxu0 0.0
    %355 = vmatpush1.msra.mxu0 0.0
    %356 = vmatprep.subr.mxu0 0.0
    %357 = vmatpush1.msra.mxu0 0.0
    %358 = vmatprep.subr.mxu0 0.0
    %359 = vmatpush1.msra.mxu0 0.0
    %360 = vmatprep.subr.mxu0 0.0
    %361 = vmatpush1.msra.mxu0 0.0
    %362 = vmatprep.subr.mxu0 0.0
    %363 = vmatpush1.msra.mxu0 0.0
    %364 = vmatprep.subr.mxu0 0.0
    %365 = vmatpush1.msra.mxu0 0.0
    %366 = vmatprep.subr.mxu0 0.0
    %367 = vmatpush1.msra.mxu0 0.0
    %368 = vmatprep.subr.mxu0 0.0
    %369 = vmatpush1.msra.mxu0 0.0
    %370 = vmatprep.subr.mxu0 0.0
    %371 = vmatpush1.msra.mxu0 0.0
    %372 = vmatprep.subr.mxu0 0.0
    %373 = vmatpush1.msra.mxu0 0.0
    %374 = vmatprep.subr.mxu0 0.0
    %375 = vmatpush1.msra.mxu0 0.0
    %376 = vmatprep.subr.mxu0 0.0
    %377 = vmatpush1.msra.mxu0 0.0
    %378 = vmatprep.subr.mxu0 0.0
    %379 = vmatpush1.msra.mxu0 0.0
    %380 = vmatprep.subr.mxu0 0.0
    %381 = vmatpush1.msra.mxu0 0.0
    %382 = vmatprep.subr.mxu0 0.0
    %383 = vmatpush1.msra.mxu0 0.0
    %384 = vmatprep.subr.mxu0 0.0
    %385 = vmatpush1.msra.mxu0 0.0
    %386 = vmatprep.subr.mxu0 0.0
    %387 = vmatpush1.msra.mxu0 0.0
    %388 = vmatprep.subr.mxu0 0.0
    %389 = vmatpush1.msra.mxu0 0.0
    %390 = vmatprep.subr.mxu0 0.0
    %391 = vmatpush1.msra.mxu0 0.0
    %392 = vmatprep.mubr.f32.mxu0 0.0
    %393 = vmatmul.mubr.f32.gmra.mrb[0].mxu0 %v319
    %v394 = vpop.f32.mrb[0].mxu0
    %v395 = vadd.f32 0.0, %v394
    %v396 = vpop.f32.mrb[0].mxu0
    %397 = vmatprep.mubr.f32.mxu0 0.0
    %398 = vmatmul.mubr.f32.gmra.mrb[0].mxu0 %v322
    %v399 = vpop.f32.mrb[0].mxu0
    %v400 = vadd.f32 0.0, %v399
    %v401 = vpop.f32.mrb[0].mxu0
    %402 = vdwg.mxu0
    %v403 = vadd.f32 %v299, %v395
    %v404 = vadd.f32 %v304, %v400
    %v405 = vmax.f32 %v403, 0.0
    %v406 = vmax.f32 %v404, 0.0
    %s407 = scalar_lea.vmem %s4, 128
    %v408 = vld [vmem:[%s407] sm:$0xff]
    %v409 = vld [vmem:[%s407 + $0x8] sm:$0xff]
    %v410 = vld [vmem:[%s407 + $0x10] sm:$0xff]
    %v411 = vld [vmem:[%s407 + $0x18] sm:$0xff]
    %v412 = vld [vmem:[%s407 + $0x20] sm:$0xff]
    %v413 = vld [vmem:[%s407 + $0x28] sm:$0xff]
    %v414 = vld [vmem:[%s407 + $0x30] sm:$0xff]
    %v415 = vld [vmem:[%s407 + $0x38] sm:$0xff]
    %v416 = vld [vmem:[%s407 + $0x40] sm:$0xff]
    %v417 = vld [vmem:[%s407 + $0x48] sm:$0xff]
    %v418 = vld [vmem:[%s407 + $0x50] sm:$0xff]
    %v419 = vld [vmem:[%s407 + $0x58] sm:$0xff]
    %v420 = vld [vmem:[%s407 + $0x60] sm:$0xff]
    %v421 = vld [vmem:[%s407 + $0x68] sm:$0xff]
    %v422 = vld [vmem:[%s407 + $0x70] sm:$0xff]
    %v423 = vld [vmem:[%s407 + $0x78] sm:$0xff]
    %424 = vmatprep.subr.mxu0 0.0
    %425 = vmatpush1.msra.mxu0 %v408
    %426 = vmatprep.subr.mxu0 0.0
    %427 = vmatpush1.msra.mxu0 %v409
    %428 = vmatprep.subr.mxu0 0.0
    %429 = vmatpush1.msra.mxu0 %v410
    %430 = vmatprep.subr.mxu0 0.0
    %431 = vmatpush1.msra.mxu0 %v411
    %432 = vmatprep.subr.mxu0 0.0
    %433 = vmatpush1.msra.mxu0 %v412
    %434 = vmatprep.subr.mxu0 0.0
    %435 = vmatpush1.msra.mxu0 %v413
    %436 = vmatprep.subr.mxu0 0.0
    %437 = vmatpush1.msra.mxu0 %v414
    %438 = vmatprep.subr.mxu0 0.0
    %439 = vmatpush1.msra.mxu0 %v415
    %440 = vmatprep.subr.mxu0 0.0
    %441 = vmatpush1.msra.mxu0 %v416
    %442 = vmatprep.subr.mxu0 0.0
    %443 = vmatpush1.msra.mxu0 %v417
    %444 = vmatprep.subr.mxu0 0.0
    %445 = vmatpush1.msra.mxu0 %v418
    %446 = vmatprep.subr.mxu0 0.0
    %447 = vmatpush1.msra.mxu0 %v419
    %448 = vmatprep.subr.mxu0 0.0
    %449 = vmatpush1.msra.mxu0 %v420
    %450 = vmatprep.subr.mxu0 0.0
    %451 = vmatpush1.msra.mxu0 %v421
    %452 = vmatprep.subr.mxu0 0.0
    %453 = vmatpush1.msra.mxu0 %v422
    %454 = vmatprep.subr.mxu0 0.0
    %455 = vmatpush1.msra.mxu0 %v423
    %456 = vmatprep.subr.mxu0 0.0
    %457 = vmatpush1.msra.mxu0 0.0
    %458 = vmatprep.subr.mxu0 0.0
    %459 = vmatpush1.msra.mxu0 0.0
    %460 = vmatprep.subr.mxu0 0.0
    %461 = vmatpush1.msra.mxu0 0.0
    %462 = vmatprep.subr.mxu0 0.0
    %463 = vmatpush1.msra.mxu0 0.0
    %464 = vmatprep.subr.mxu0 0.0
    %465 = vmatpush1.msra.mxu0 0.0
    %466 = vmatprep.subr.mxu0 0.0
    %467 = vmatpush1.msra.mxu0 0.0
    %468 = vmatprep.subr.mxu0 0.0
    %469 = vmatpush1.msra.mxu0 0.0
    %470 = vmatprep.subr.mxu0 0.0
    %471 = vmatpush1.msra.mxu0 0.0
    %472 = vmatprep.subr.mxu0 0.0
    %473 = vmatpush1.msra.mxu0 0.0
    %474 = vmatprep.subr.mxu0 0.0
    %475 = vmatpush1.msra.mxu0 0.0
    %476 = vmatprep.subr.mxu0 0.0
    %477 = vmatpush1.msra.mxu0 0.0
    %478 = vmatprep.subr.mxu0 0.0
    %479 = vmatpush1.msra.mxu0 0.0
    %480 = vmatprep.subr.mxu0 0.0
    %481 = vmatpush1.msra.mxu0 0.0
    %482 = vmatprep.subr.mxu0 0.0
    %483 = vmatpush1.msra.mxu0 0.0
    %484 = vmatprep.subr.mxu0 0.0
    %485 = vmatpush1.msra.mxu0 0.0
    %486 = vmatprep.subr.mxu0 0.0
    %487 = vmatpush1.msra.mxu0 0.0
    %488 = vmatprep.mubr.f32.mxu0 0.0
    %489 = vmatmul.mubr.f32.gmra.mrb[0].mxu0 %v405
    %v490 = vpop.f32.mrb[0].mxu0
    %v491 = vadd.f32 0.0, %v490
    %v492 = vpop.f32.mrb[0].mxu0
    %493 = vmatprep.mubr.f32.mxu0 0.0
    %494 = vmatmul.mubr.f32.gmra.mrb[0].mxu0 %v406
    %v495 = vpop.f32.mrb[0].mxu0
    %v496 = vadd.f32 0.0, %v495
    %v497 = vpop.f32.mrb[0].mxu0
    %498 = vdwg.mxu0
    %v499 = vadd.f32 %v211, %v491
    %v500 = vadd.f32 %v216, %v496
    %s501 = scalar_lea.vmem %s5, 1
    %v502 = vld [vmem:[%s501] sm:$0x1]
    %v504 = vlaneseq
    %v505 = vshrl.u32 %v504, 7
    %v506 = vsub.s32 0, %v505
    %v507 = vrot.slane %v502, %v506
    %v509 = vadd.f32 %v499, %v507
    %v510 = vadd.f32 %v500, %v507
    %s511 = scalar_lea.vmem %s1, 64
    %v512 = vld [vmem:[%s511] sm:$0xff]
    %v513 = vld [vmem:[%s511 + $0x8] sm:$0xff]
    %v514 = vld [vmem:[%s511 + $0x10] sm:$0xff]
    %v515 = vld [vmem:[%s511 + $0x18] sm:$0xff]
    %s516 = scalar_lea.vmem %s2, 2
    %v517 = vld [vmem:[%s516] sm:$0x1]
    %v519 = vlaneseq
    %v520 = vshrl.u32 %v519, 7
    %v521 = vsub.s32 0, %v520
    %v522 = vrot.slane %v517, %v521
    %524 = vmatprep.subr.mxu0 0.0
    %525 = vmatpush1.msra.mxu0 %v512
    %526 = vmatprep.subr.mxu0 0.0
    %527 = vmatpush1.msra.mxu0 %v513
    %528 = vmatprep.subr.mxu0 0.0
    %529 = vmatpush1.msra.mxu0 %v514
    %530 = vmatprep.subr.mxu0 0.0
    %531 = vmatpush1.msra.mxu0 %v515
    %532 = vmatprep.subr.mxu0 0.0
    %533 = vmatpush1.msra.mxu0 0.0
    %534 = vmatprep.subr.mxu0 0.0
    %535 = vmatpush1.msra.mxu0 0.0
    %536 = vmatprep.subr.mxu0 0.0
    %537 = vmatpush1.msra.mxu0 0.0
    %538 = vmatprep.subr.mxu0 0.0
    %539 = vmatpush1.msra.mxu0 0.0
    %540 = vmatprep.subr.mxu0 0.0
    %541 = vmatpush1.msra.mxu0 0.0
    %542 = vmatprep.subr.mxu0 0.0
    %543 = vmatpush1.msra.mxu0 0.0
    %544 = vmatprep.subr.mxu0 0.0
    %545 = vmatpush1.msra.mxu0 0.0
    %546 = vmatprep.subr.mxu0 0.0
    %547 = vmatpush1.msra.mxu0 0.0
    %548 = vmatprep.subr.mxu0 0.0
    %549 = vmatpush1.msra.mxu0 0.0
    %550 = vmatprep.subr.mxu0 0.0
    %551 = vmatpush1.msra.mxu0 0.0
    %552 = vmatprep.subr.mxu0 0.0
    %553 = vmatpush1.msra.mxu0 0.0
    %554 = vmatprep.subr.mxu0 0.0
    %555 = vmatpush1.msra.mxu0 0.0
    %556 = vmatprep.subr.mxu0 0.0
    %557 = vmatpush1.msra.mxu0 0.0
    %558 = vmatprep.subr.mxu0 0.0
    %559 = vmatpush1.msra.mxu0 0.0
    %560 = vmatprep.subr.mxu0 0.0
    %561 = vmatpush1.msra.mxu0 0.0
    %562 = vmatprep.subr.mxu0 0.0
    %563 = vmatpush1.msra.mxu0 0.0
    %564 = vmatprep.subr.mxu0 0.0
    %565 = vmatpush1.msra.mxu0 0.0
    %566 = vmatprep.subr.mxu0 0.0
    %567 = vmatpush1.msra.mxu0 0.0
    %568 = vmatprep.subr.mxu0 0.0
    %569 = vmatpush1.msra.mxu0 0.0
    %570 = vmatprep.subr.mxu0 0.0
    %571 = vmatpush1.msra.mxu0 0.0
    %572 = vmatprep.subr.mxu0 0.0
    %573 = vmatpush1.msra.mxu0 0.0
    %574 = vmatprep.subr.mxu0 0.0
    %575 = vmatpush1.msra.mxu0 0.0
    %576 = vmatprep.subr.mxu0 0.0
    %577 = vmatpush1.msra.mxu0 0.0
    %578 = vmatprep.subr.mxu0 0.0
    %579 = vmatpush1.msra.mxu0 0.0
    %580 = vmatprep.subr.mxu0 0.0
    %581 = vmatpush1.msra.mxu0 0.0
    %582 = vmatprep.subr.mxu0 0.0
    %583 = vmatpush1.msra.mxu0 0.0
    %584 = vmatprep.subr.mxu0 0.0
    %585 = vmatpush1.msra.mxu0 0.0
    %586 = vmatprep.subr.mxu0 0.0
    %587 = vmatpush1.msra.mxu0 0.0
    %588 = vmatprep.mubr.f32.mxu0 0.0
    %589 = vmatmul.mubr.f32.gmra.mrb[0].mxu0 %v39
    %v590 = vpop.f32.mrb[0].mxu0
    %v591 = vadd.f32 %v522, %v590
    %v592 = vpop.f32.mrb[0].mxu0
    %593 = vmatprep.mubr.f32.mxu0 0.0
    %594 = vmatmul.mubr.f32.gmra.mrb[0].mxu0 %v42
    %v595 = vpop.f32.mrb[0].mxu0
    %v596 = vadd.f32 %v522, %v595
    %v597 = vpop.f32.mrb[0].mxu0
    %598 = vdwg.mxu0
    %s599 = scalar_lea.vmem %s3, 144
    %v600 = vld [vmem:[%s599] sm:$0xff]
    %v601 = vld [vmem:[%s599 + $0x8] sm:$0xff]
    %v602 = vld [vmem:[%s599 + $0x10] sm:$0xff]
    %v603 = vld [vmem:[%s599 + $0x18] sm:$0xff]
    %v604 = vld [vmem:[%s599 + $0x20] sm:$0xff]
    %v605 = vld [vmem:[%s599 + $0x28] sm:$0xff]
    %v606 = vld [vmem:[%s599 + $0x30] sm:$0xff]
    %v607 = vld [vmem:[%s599 + $0x38] sm:$0xff]
    %v608 = vld [vmem:[%s599 + $0x40] sm:$0x3]
    %v610 = vsel %vm317, %v509, 0
    %v613 = vsel %vm317, %v510, 0
    %v616 = vsel %vm324, %v608, 0
    %618 = vmatprep.subr.mxu0 0.0
    %619 = vmatpush1.msra.mxu0 %v600
    %620 = vmatprep.subr.mxu0 0.0
    %621 = vmatpush1.msra.mxu0 %v601
    %622 = vmatprep.subr.mxu0 0.0
    %623 = vmatpush1.msra.mxu0 %v602
    %624 = vmatprep.subr.mxu0 0.0
    %625 = vmatpush1.msra.mxu0 %v603
    %626 = vmatprep.subr.mxu0 0.0
    %627 = vmatpush1.msra.mxu0 %v604
    %628 = vmatprep.subr.mxu0 0.0
    %629 = vmatpush1.msra.mxu0 %v605
    %630 = vmatprep.subr.mxu0 0.0
    %631 = vmatpush1.msra.mxu0 %v606
    %632 = vmatprep.subr.mxu0 0.0
    %633 = vmatpush1.msra.mxu0 %v607
    %634 = vmatprep.subr.mxu0 0.0
    %635 = vmatpush1.msra.mxu0 %v616
    %636 = vmatprep.subr.mxu0 0.0
    %637 = vmatpush1.msra.mxu0 0.0
    %638 = vmatprep.subr.mxu0 0.0
    %639 = vmatpush1.msra.mxu0 0.0
    %640 = vmatprep.subr.mxu0 0.0
    %641 = vmatpush1.msra.mxu0 0.0
    %642 = vmatprep.subr.mxu0 0.0
    %643 = vmatpush1.msra.mxu0 0.0
    %644 = vmatprep.subr.mxu0 0.0
    %645 = vmatpush1.msra.mxu0 0.0
    %646 = vmatprep.subr.mxu0 0.0
    %647 = vmatpush1.msra.mxu0 0.0
    %648 = vmatprep.subr.mxu0 0.0
    %649 = vmatpush1.msra.mxu0 0.0
    %650 = vmatprep.subr.mxu0 0.0
    %651 = vmatpush1.msra.mxu0 0.0
    %652 = vmatprep.subr.mxu0 0.0
    %653 = vmatpush1.msra.mxu0 0.0
    %654 = vmatprep.subr.mxu0 0.0
    %655 = vmatpush1.msra.mxu0 0.0
    %656 = vmatprep.subr.mxu0 0.0
    %657 = vmatpush1.msra.mxu0 0.0
    %658 = vmatprep.subr.mxu0 0.0
    %659 = vmatpush1.msra.mxu0 0.0
    %660 = vmatprep.subr.mxu0 0.0
    %661 = vmatpush1.msra.mxu0 0.0
    %662 = vmatprep.subr.mxu0 0.0
    %663 = vmatpush1.msra.mxu0 0.0
    %664 = vmatprep.subr.mxu0 0.0
    %665 = vmatpush1.msra.mxu0 0.0
    %666 = vmatprep.subr.mxu0 0.0
    %667 = vmatpush1.msra.mxu0 0.0
    %668 = vmatprep.subr.mxu0 0.0
    %669 = vmatpush1.msra.mxu0 0.0
    %670 = vmatprep.subr.mxu0 0.0
    %671 = vmatpush1.msra.mxu0 0.0
    %672 = vmatprep.subr.mxu0 0.0
    %673 = vmatpush1.msra.mxu0 0.0
    %674 = vmatprep.subr.mxu0 0.0
    %675 = vmatpush1.msra.mxu0 0.0
    %676 = vmatprep.subr.mxu0 0.0
    %677 = vmatpush1.msra.mxu0 0.0
    %678 = vmatprep.subr.mxu0 0.0
    %679 = vmatpush1.msra.mxu0 0.0
    %680 = vmatprep.subr.mxu0 0.0
    %681 = vmatpush1.msra.mxu0 0.0
    %682 = vmatprep.mubr.f32.mxu0 0.0
    %683 = vmatmul.mubr.f32.gmra.mrb[0].mxu0 %v610
    %v684 = vpop.f32.mrb[0].mxu0
    %v685 = vadd.f32 0.0, %v684
    %v686 = vpop.f32.mrb[0].mxu0
    %687 = vmatprep.mubr.f32.mxu0 0.0
    %688 = vmatmul.mubr.f32.gmra.mrb[0].mxu0 %v613
    %v689 = vpop.f32.mrb[0].mxu0
    %v690 = vadd.f32 0.0, %v689
    %v691 = vpop.f32.mrb[0].mxu0
    %692 = vdwg.mxu0
    %v693 = vadd.f32 %v591, %v685
    %v694 = vadd.f32 %v596, %v690
    %v695 = vmax.f32 %v693, 0.0
    %v696 = vmax.f32 %v694, 0.0
    %s697 = scalar_lea.vmem %s4, 256
    %v698 = vld [vmem:[%s697] sm:$0xff]
    %v699 = vld [vmem:[%s697 + $0x8] sm:$0xff]
    %v700 = vld [vmem:[%s697 + $0x10] sm:$0xff]
    %v701 = vld [vmem:[%s697 + $0x18] sm:$0xff]
    %v702 = vld [vmem:[%s697 + $0x20] sm:$0xff]
    %v703 = vld [vmem:[%s697 + $0x28] sm:$0xff]
    %v704 = vld [vmem:[%s697 + $0x30] sm:$0xff]
    %v705 = vld [vmem:[%s697 + $0x38] sm:$0xff]
    %v706 = vld [vmem:[%s697 + $0x40] sm:$0xff]
    %v707 = vld [vmem:[%s697 + $0x48] sm:$0xff]
    %v708 = vld [vmem:[%s697 + $0x50] sm:$0xff]
    %v709 = vld [vmem:[%s697 + $0x58] sm:$0xff]
    %v710 = vld [vmem:[%s697 + $0x60] sm:$0xff]
    %v711 = vld [vmem:[%s697 + $0x68] sm:$0xff]
    %v712 = vld [vmem:[%s697 + $0x70] sm:$0xff]
    %v713 = vld [vmem:[%s697 + $0x78] sm:$0xff]
    %714 = vmatprep.subr.mxu0 0.0
    %715 = vmatpush1.msra.mxu0 %v698
    %716 = vmatprep.subr.mxu0 0.0
    %717 = vmatpush1.msra.mxu0 %v699
    %718 = vmatprep.subr.mxu0 0.0
    %719 = vmatpush1.msra.mxu0 %v700
    %720 = vmatprep.subr.mxu0 0.0
    %721 = vmatpush1.msra.mxu0 %v701
    %722 = vmatprep.subr.mxu0 0.0
    %723 = vmatpush1.msra.mxu0 %v702
    %724 = vmatprep.subr.mxu0 0.0
    %725 = vmatpush1.msra.mxu0 %v703
    %726 = vmatprep.subr.mxu0 0.0
    %727 = vmatpush1.msra.mxu0 %v704
    %728 = vmatprep.subr.mxu0 0.0
    %729 = vmatpush1.msra.mxu0 %v705
    %730 = vmatprep.subr.mxu0 0.0
    %731 = vmatpush1.msra.mxu0 %v706
    %732 = vmatprep.subr.mxu0 0.0
    %733 = vmatpush1.msra.mxu0 %v707
    %734 = vmatprep.subr.mxu0 0.0
    %735 = vmatpush1.msra.mxu0 %v708
    %736 = vmatprep.subr.mxu0 0.0
    %737 = vmatpush1.msra.mxu0 %v709
    %738 = vmatprep.subr.mxu0 0.0
    %739 = vmatpush1.msra.mxu0 %v710
    %740 = vmatprep.subr.mxu0 0.0
    %741 = vmatpush1.msra.mxu0 %v711
    %742 = vmatprep.subr.mxu0 0.0
    %743 = vmatpush1.msra.mxu0 %v712
    %744 = vmatprep.subr.mxu0 0.0
    %745 = vmatpush1.msra.mxu0 %v713
    %746 = vmatprep.subr.mxu0 0.0
    %747 = vmatpush1.msra.mxu0 0.0
    %748 = vmatprep.subr.mxu0 0.0
    %749 = vmatpush1.msra.mxu0 0.0
    %750 = vmatprep.subr.mxu0 0.0
    %751 = vmatpush1.msra.mxu0 0.0
    %752 = vmatprep.subr.mxu0 0.0
    %753 = vmatpush1.msra.mxu0 0.0
    %754 = vmatprep.subr.mxu0 0.0
    %755 = vmatpush1.msra.mxu0 0.0
    %756 = vmatprep.subr.mxu0 0.0
    %757 = vmatpush1.msra.mxu0 0.0
    %758 = vmatprep.subr.mxu0 0.0
    %759 = vmatpush1.msra.mxu0 0.0
    %760 = vmatprep.subr.mxu0 0.0
    %761 = vmatpush1.msra.mxu0 0.0
    %762 = vmatprep.subr.mxu0 0.0
    %763 = vmatpush1.msra.mxu0 0.0
    %764 = vmatprep.subr.mxu0 0.0
    %765 = vmatpush1.msra.mxu0 0.0
    %766 = vmatprep.subr.mxu0 0.0
    %767 = vmatpush1.msra.mxu0 0.0
    %768 = vmatprep.subr.mxu0 0.0
    %769 = vmatpush1.msra.mxu0 0.0
    %770 = vmatprep.subr.mxu0 0.0
    %771 = vmatpush1.msra.mxu0 0.0
    %772 = vmatprep.subr.mxu0 0.0
    %773 = vmatpush1.msra.mxu0 0.0
    %774 = vmatprep.subr.mxu0 0.0
    %775 = vmatpush1.msra.mxu0 0.0
    %776 = vmatprep.subr.mxu0 0.0
    %777 = vmatpush1.msra.mxu0 0.0
    %778 = vmatprep.mubr.f32.mxu0 0.0
    %779 = vmatmul.mubr.f32.gmra.mrb[0].mxu0 %v695
    %v780 = vpop.f32.mrb[0].mxu0
    %v781 = vadd.f32 0.0, %v780
    %v782 = vpop.f32.mrb[0].mxu0
    %783 = vmatprep.mubr.f32.mxu0 0.0
    %784 = vmatmul.mubr.f32.gmra.mrb[0].mxu0 %v696
    %v785 = vpop.f32.mrb[0].mxu0
    %v786 = vadd.f32 0.0, %v785
    %v787 = vpop.f32.mrb[0].mxu0
    %788 = vdwg.mxu0
    %v789 = vadd.f32 %v509, %v781
    %v790 = vadd.f32 %v510, %v786
    %s791 = scalar_lea.vmem %s5, 2
    %v792 = vld [vmem:[%s791] sm:$0x1]
    %v794 = vlaneseq
    %v795 = vshrl.u32 %v794, 7
    %v796 = vsub.s32 0, %v795
    %v797 = vrot.slane %v792, %v796
    %v799 = vadd.f32 %v789, %v797
    %v800 = vadd.f32 %v790, %v797
    %s801 = scalar_lea.vmem %s1, 96
    %v802 = vld [vmem:[%s801] sm:$0xff]
    %v803 = vld [vmem:[%s801 + $0x8] sm:$0xff]
    %v804 = vld [vmem:[%s801 + $0x10] sm:$0xff]
    %v805 = vld [vmem:[%s801 + $0x18] sm:$0xff]
    %s806 = scalar_lea.vmem %s2, 3
    %v807 = vld [vmem:[%s806] sm:$0x1]
    %v809 = vlaneseq
    %v810 = vshrl.u32 %v809, 7
    %v811 = vsub.s32 0, %v810
    %v812 = vrot.slane %v807, %v811
    %814 = vmatprep.subr.mxu0 0.0
    %815 = vmatpush1.msra.mxu0 %v802
    %816 = vmatprep.subr.mxu0 0.0
    %817 = vmatpush1.msra.mxu0 %v803
    %818 = vmatprep.subr.mxu0 0.0
    %819 = vmatpush1.msra.mxu0 %v804
    %820 = vmatprep.subr.mxu0 0.0
    %821 = vmatpush1.msra.mxu0 %v805
    %822 = vmatprep.subr.mxu0 0.0
    %823 = vmatpush1.msra.mxu0 0.0
    %824 = vmatprep.subr.mxu0 0.0
    %825 = vmatpush1.msra.mxu0 0.0
    %826 = vmatprep.subr.mxu0 0.0
    %827 = vmatpush1.msra.mxu0 0.0
    %828 = vmatprep.subr.mxu0 0.0
    %829 = vmatpush1.msra.mxu0 0.0
    %830 = vmatprep.subr.mxu0 0.0
    %831 = vmatpush1.msra.mxu0 0.0
    %832 = vmatprep.subr.mxu0 0.0
    %833 = vmatpush1.msra.mxu0 0.0
    %834 = vmatprep.subr.mxu0 0.0
    %835 = vmatpush1.msra.mxu0 0.0
    %836 = vmatprep.subr.mxu0 0.0
    %837 = vmatpush1.msra.mxu0 0.0
    %838 = vmatprep.subr.mxu0 0.0
    %839 = vmatpush1.msra.mxu0 0.0
    %840 = vmatprep.subr.mxu0 0.0
    %841 = vmatpush1.msra.mxu0 0.0
    %842 = vmatprep.subr.mxu0 0.0
    %843 = vmatpush1.msra.mxu0 0.0
    %844 = vmatprep.subr.mxu0 0.0
    %845 = vmatpush1.msra.mxu0 0.0
    %846 = vmatprep.subr.mxu0 0.0
    %847 = vmatpush1.msra.mxu0 0.0
    %848 = vmatprep.subr.mxu0 0.0
    %849 = vmatpush1.msra.mxu0 0.0
    %850 = vmatprep.subr.mxu0 0.0
    %851 = vmatpush1.msra.mxu0 0.0
    %852 = vmatprep.subr.mxu0 0.0
    %853 = vmatpush1.msra.mxu0 0.0
    %854 = vmatprep.subr.mxu0 0.0
    %855 = vmatpush1.msra.mxu0 0.0
    %856 = vmatprep.subr.mxu0 0.0
    %857 = vmatpush1.msra.mxu0 0.0
    %858 = vmatprep.subr.mxu0 0.0
    %859 = vmatpush1.msra.mxu0 0.0
    %860 = vmatprep.subr.mxu0 0.0
    %861 = vmatpush1.msra.mxu0 0.0
    %862 = vmatprep.subr.mxu0 0.0
    %863 = vmatpush1.msra.mxu0 0.0
    %864 = vmatprep.subr.mxu0 0.0
    %865 = vmatpush1.msra.mxu0 0.0
    %866 = vmatprep.subr.mxu0 0.0
    %867 = vmatpush1.msra.mxu0 0.0
    %868 = vmatprep.subr.mxu0 0.0
    %869 = vmatpush1.msra.mxu0 0.0
    %870 = vmatprep.subr.mxu0 0.0
    %871 = vmatpush1.msra.mxu0 0.0
    %872 = vmatprep.subr.mxu0 0.0
    %873 = vmatpush1.msra.mxu0 0.0
    %874 = vmatprep.subr.mxu0 0.0
    %875 = vmatpush1.msra.mxu0 0.0
    %876 = vmatprep.subr.mxu0 0.0
    %877 = vmatpush1.msra.mxu0 0.0
    %878 = vmatprep.mubr.f32.mxu0 0.0
    %879 = vmatmul.mubr.f32.gmra.mrb[0].mxu0 %v39
    %v880 = vpop.f32.mrb[0].mxu0
    %v881 = vadd.f32 %v812, %v880
    %v882 = vpop.f32.mrb[0].mxu0
    %883 = vmatprep.mubr.f32.mxu0 0.0
    %884 = vmatmul.mubr.f32.gmra.mrb[0].mxu0 %v42
    %v885 = vpop.f32.mrb[0].mxu0
    %v886 = vadd.f32 %v812, %v885
    %v887 = vpop.f32.mrb[0].mxu0
    %888 = vdwg.mxu0
    %s889 = scalar_lea.vmem %s3, 216
    %v890 = vld [vmem:[%s889] sm:$0xff]
    %v891 = vld [vmem:[%s889 + $0x8] sm:$0xff]
    %v892 = vld [vmem:[%s889 + $0x10] sm:$0xff]
    %v893 = vld [vmem:[%s889 + $0x18] sm:$0xff]
    %v894 = vld [vmem:[%s889 + $0x20] sm:$0xff]
    %v895 = vld [vmem:[%s889 + $0x28] sm:$0xff]
    %v896 = vld [vmem:[%s889 + $0x30] sm:$0xff]
    %v897 = vld [vmem:[%s889 + $0x38] sm:$0xff]
    %v898 = vld [vmem:[%s889 + $0x40] sm:$0x3]
    %v900 = vsel %vm317, %v799, 0
    %v903 = vsel %vm317, %v800, 0
    %v906 = vsel %vm324, %v898, 0
    %908 = vmatprep.subr.mxu0 0.0
    %909 = vmatpush1.msra.mxu0 %v890
    %910 = vmatprep.subr.mxu0 0.0
    %911 = vmatpush1.msra.mxu0 %v891
    %912 = vmatprep.subr.mxu0 0.0
    %913 = vmatpush1.msra.mxu0 %v892
    %914 = vmatprep.subr.mxu0 0.0
    %915 = vmatpush1.msra.mxu0 %v893
    %916 = vmatprep.subr.mxu0 0.0
    %917 = vmatpush1.msra.mxu0 %v894
    %918 = vmatprep.subr.mxu0 0.0
    %919 = vmatpush1.msra.mxu0 %v895
    %920 = vmatprep.subr.mxu0 0.0
    %921 = vmatpush1.msra.mxu0 %v896
    %922 = vmatprep.subr.mxu0 0.0
    %923 = vmatpush1.msra.mxu0 %v897
    %924 = vmatprep.subr.mxu0 0.0
    %925 = vmatpush1.msra.mxu0 %v906
    %926 = vmatprep.subr.mxu0 0.0
    %927 = vmatpush1.msra.mxu0 0.0
    %928 = vmatprep.subr.mxu0 0.0
    %929 = vmatpush1.msra.mxu0 0.0
    %930 = vmatprep.subr.mxu0 0.0
    %931 = vmatpush1.msra.mxu0 0.0
    %932 = vmatprep.subr.mxu0 0.0
    %933 = vmatpush1.msra.mxu0 0.0
    %934 = vmatprep.subr.mxu0 0.0
    %935 = vmatpush1.msra.mxu0 0.0
    %936 = vmatprep.subr.mxu0 0.0
    %937 = vmatpush1.msra.mxu0 0.0
    %938 = vmatprep.subr.mxu0 0.0
    %939 = vmatpush1.msra.mxu0 0.0
    %940 = vmatprep.subr.mxu0 0.0
    %941 = vmatpush1.msra.mxu0 0.0
    %942 = vmatprep.subr.mxu0 0.0
    %943 = vmatpush1.msra.mxu0 0.0
    %944 = vmatprep.subr.mxu0 0.0
    %945 = vmatpush1.msra.mxu0 0.0
    %946 = vmatprep.subr.mxu0 0.0
    %947 = vmatpush1.msra.mxu0 0.0
    %948 = vmatprep.subr.mxu0 0.0
    %949 = vmatpush1.msra.mxu0 0.0
    %950 = vmatprep.subr.mxu0 0.0
    %951 = vmatpush1.msra.mxu0 0.0
    %952 = vmatprep.subr.mxu0 0.0
    %953 = vmatpush1.msra.mxu0 0.0
    %954 = vmatprep.subr.mxu0 0.0
    %955 = vmatpush1.msra.mxu0 0.0
    %956 = vmatprep.subr.mxu0 0.0
    %957 = vmatpush1.msra.mxu0 0.0
    %958 = vmatprep.subr.mxu0 0.0
    %959 = vmatpush1.msra.mxu0 0.0
    %960 = vmatprep.subr.mxu0 0.0
    %961 = vmatpush1.msra.mxu0 0.0
    %962 = vmatprep.subr.mxu0 0.0
    %963 = vmatpush1.msra.mxu0 0.0
    %964 = vmatprep.subr.mxu0 0.0
    %965 = vmatpush1.msra.mxu0 0.0
    %966 = vmatprep.subr.mxu0 0.0
    %967 = vmatpush1.msra.mxu0 0.0
    %968 = vmatprep.subr.mxu0 0.0
    %969 = vmatpush1.msra.mxu0 0.0
    %970 = vmatprep.subr.mxu0 0.0
    %971 = vmatpush1.msra.mxu0 0.0
    %972 = vmatprep.mubr.f32.mxu0 0.0
    %973 = vmatmul.mubr.f32.gmra.mrb[0].mxu0 %v900
    %v974 = vpop.f32.mrb[0].mxu0
    %v975 = vadd.f32 0.0, %v974
    %v976 = vpop.f32.mrb[0].mxu0
    %977 = vmatprep.mubr.f32.mxu0 0.0
    %978 = vmatmul.mubr.f32.gmra.mrb[0].mxu0 %v903
    %v979 = vpop.f32.mrb[0].mxu0
    %v980 = vadd.f32 0.0, %v979
    %v981 = vpop.f32.mrb[0].mxu0
    %982 = vdwg.mxu0
    %v983 = vadd.f32 %v881, %v975
    %v984 = vadd.f32 %v886, %v980
    %v985 = vmax.f32 %v983, 0.0
    %v986 = vmax.f32 %v984, 0.0
    %s987 = scalar_lea.vmem %s4, 384
    %v988 = vld [vmem:[%s987] sm:$0xff]
    %v989 = vld [vmem:[%s987 + $0x8] sm:$0xff]
    %v990 = vld [vmem:[%s987 + $0x10] sm:$0xff]
    %v991 = vld [vmem:[%s987 + $0x18] sm:$0xff]
    %v992 = vld [vmem:[%s987 + $0x20] sm:$0xff]
    %v993 = vld [vmem:[%s987 + $0x28] sm:$0xff]
    %v994 = vld [vmem:[%s987 + $0x30] sm:$0xff]
    %v995 = vld [vmem:[%s987 + $0x38] sm:$0xff]
    %v996 = vld [vmem:[%s987 + $0x40] sm:$0xff]
    %v997 = vld [vmem:[%s987 + $0x48] sm:$0xff]
    %v998 = vld [vmem:[%s987 + $0x50] sm:$0xff]
    %v999 = vld [vmem:[%s987 + $0x58] sm:$0xff]
    %v1000 = vld [vmem:[%s987 + $0x60] sm:$0xff]
    %v1001 = vld [vmem:[%s987 + $0x68] sm:$0xff]
    %v1002 = vld [vmem:[%s987 + $0x70] sm:$0xff]
    %v1003 = vld [vmem:[%s987 + $0x78] sm:$0xff]
    %1004 = vmatprep.subr.mxu0 0.0
    %1005 = vmatpush1.msra.mxu0 %v988
    %1006 = vmatprep.subr.mxu0 0.0
    %1007 = vmatpush1.msra.mxu0 %v989
    %1008 = vmatprep.subr.mxu0 0.0
    %1009 = vmatpush1.msra.mxu0 %v990
    %1010 = vmatprep.subr.mxu0 0.0
    %1011 = vmatpush1.msra.mxu0 %v991
    %1012 = vmatprep.subr.mxu0 0.0
    %1013 = vmatpush1.msra.mxu0 %v992
    %1014 = vmatprep.subr.mxu0 0.0
    %1015 = vmatpush1.msra.mxu0 %v993
    %1016 = vmatprep.subr.mxu0 0.0
    %1017 = vmatpush1.msra.mxu0 %v994
    %1018 = vmatprep.subr.mxu0 0.0
    %1019 = vmatpush1.msra.mxu0 %v995
    %1020 = vmatprep.subr.mxu0 0.0
    %1021 = vmatpush1.msra.mxu0 %v996
    %1022 = vmatprep.subr.mxu0 0.0
    %1023 = vmatpush1.msra.mxu0 %v997
    %1024 = vmatprep.subr.mxu0 0.0
    %1025 = vmatpush1.msra.mxu0 %v998
    %1026 = vmatprep.subr.mxu0 0.0
    %1027 = vmatpush1.msra.mxu0 %v999
    %1028 = vmatprep.subr.mxu0 0.0
    %1029 = vmatpush1.msra.mxu0 %v1000
    %1030 = vmatprep.subr.mxu0 0.0
    %1031 = vmatpush1.msra.mxu0 %v1001
    %1032 = vmatprep.subr.mxu0 0.0
    %1033 = vmatpush1.msra.mxu0 %v1002
    %1034 = vmatprep.subr.mxu0 0.0
    %1035 = vmatpush1.msra.mxu0 %v1003
    %1036 = vmatprep.subr.mxu0 0.0
    %1037 = vmatpush1.msra.mxu0 0.0
    %1038 = vmatprep.subr.mxu0 0.0
    %1039 = vmatpush1.msra.mxu0 0.0
    %1040 = vmatprep.subr.mxu0 0.0
    %1041 = vmatpush1.msra.mxu0 0.0
    %1042 = vmatprep.subr.mxu0 0.0
    %1043 = vmatpush1.msra.mxu0 0.0
    %1044 = vmatprep.subr.mxu0 0.0
    %1045 = vmatpush1.msra.mxu0 0.0
    %1046 = vmatprep.subr.mxu0 0.0
    %1047 = vmatpush1.msra.mxu0 0.0
    %1048 = vmatprep.subr.mxu0 0.0
    %1049 = vmatpush1.msra.mxu0 0.0
    %1050 = vmatprep.subr.mxu0 0.0
    %1051 = vmatpush1.msra.mxu0 0.0
    %1052 = vmatprep.subr.mxu0 0.0
    %1053 = vmatpush1.msra.mxu0 0.0
    %1054 = vmatprep.subr.mxu0 0.0
    %1055 = vmatpush1.msra.mxu0 0.0
    %1056 = vmatprep.subr.mxu0 0.0
    %1057 = vmatpush1.msra.mxu0 0.0
    %1058 = vmatprep.subr.mxu0 0.0
    %1059 = vmatpush1.msra.mxu0 0.0
    %1060 = vmatprep.subr.mxu0 0.0
    %1061 = vmatpush1.msra.mxu0 0.0
    %1062 = vmatprep.subr.mxu0 0.0
    %1063 = vmatpush1.msra.mxu0 0.0
    %1064 = vmatprep.subr.mxu0 0.0
    %1065 = vmatpush1.msra.mxu0 0.0
    %1066 = vmatprep.subr.mxu0 0.0
    %1067 = vmatpush1.msra.mxu0 0.0
    %1068 = vmatprep.mubr.f32.mxu0 0.0
    %1069 = vmatmul.mubr.f32.gmra.mrb[0].mxu0 %v985
    %v1070 = vpop.f32.mrb[0].mxu0
    %v1071 = vadd.f32 0.0, %v1070
    %v1072 = vpop.f32.mrb[0].mxu0
    %1073 = vmatprep.mubr.f32.mxu0 0.0
    %1074 = vmatmul.mubr.f32.gmra.mrb[0].mxu0 %v986
    %v1075 = vpop.f32.mrb[0].mxu0
    %v1076 = vadd.f32 0.0, %v1075
    %v1077 = vpop.f32.mrb[0].mxu0
    %1078 = vdwg.mxu0
    %v1079 = vadd.f32 %v799, %v1071
    %v1080 = vadd.f32 %v800, %v1076
    %s1081 = scalar_lea.vmem %s5, 3
    %v1082 = vld [vmem:[%s1081] sm:$0x1]
    %v1084 = vlaneseq
    %v1085 = vshrl.u32 %v1084, 7
    %v1086 = vsub.s32 0, %v1085
    %v1087 = vrot.slane %v1082, %v1086
    %v1089 = vadd.f32 %v1079, %v1087
    %v1090 = vadd.f32 %v1080, %v1087
    %s1091 = scalar_lea.vmem %s1, 128
    %v1092 = vld [vmem:[%s1091] sm:$0xff]
    %v1093 = vld [vmem:[%s1091 + $0x8] sm:$0xff]
    %v1094 = vld [vmem:[%s1091 + $0x10] sm:$0xff]
    %v1095 = vld [vmem:[%s1091 + $0x18] sm:$0xff]
    %s1096 = scalar_lea.vmem %s2, 4
    %v1097 = vld [vmem:[%s1096] sm:$0x1]
    %v1099 = vlaneseq
    %v1100 = vshrl.u32 %v1099, 7
    %v1101 = vsub.s32 0, %v1100
    %v1102 = vrot.slane %v1097, %v1101
    %1104 = vmatprep.subr.mxu0 0.0
    %1105 = vmatpush1.msra.mxu0 %v1092
    %1106 = vmatprep.subr.mxu0 0.0
    %1107 = vmatpush1.msra.mxu0 %v1093
    %1108 = vmatprep.subr.mxu0 0.0
    %1109 = vmatpush1.msra.mxu0 %v1094
    %1110 = vmatprep.subr.mxu0 0.0
    %1111 = vmatpush1.msra.mxu0 %v1095
    %1112 = vmatprep.subr.mxu0 0.0
    %1113 = vmatpush1.msra.mxu0 0.0
    %1114 = vmatprep.subr.mxu0 0.0
    %1115 = vmatpush1.msra.mxu0 0.0
    %1116 = vmatprep.subr.mxu0 0.0
    %1117 = vmatpush1.msra.mxu0 0.0
    %1118 = vmatprep.subr.mxu0 0.0
    %1119 = vmatpush1.msra.mxu0 0.0
    %1120 = vmatprep.subr.mxu0 0.0
    %1121 = vmatpush1.msra.mxu0 0.0
    %1122 = vmatprep.subr.mxu0 0.0
    %1123 = vmatpush1.msra.mxu0 0.0
    %1124 = vmatprep.subr.mxu0 0.0
    %1125 = vmatpush1.msra.mxu0 0.0
    %1126 = vmatprep.subr.mxu0 0.0
    %1127 = vmatpush1.msra.mxu0 0.0
    %1128 = vmatprep.subr.mxu0 0.0
    %1129 = vmatpush1.msra.mxu0 0.0
    %1130 = vmatprep.subr.mxu0 0.0
    %1131 = vmatpush1.msra.mxu0 0.0
    %1132 = vmatprep.subr.mxu0 0.0
    %1133 = vmatpush1.msra.mxu0 0.0
    %1134 = vmatprep.subr.mxu0 0.0
    %1135 = vmatpush1.msra.mxu0 0.0
    %1136 = vmatprep.subr.mxu0 0.0
    %1137 = vmatpush1.msra.mxu0 0.0
    %1138 = vmatprep.subr.mxu0 0.0
    %1139 = vmatpush1.msra.mxu0 0.0
    %1140 = vmatprep.subr.mxu0 0.0
    %1141 = vmatpush1.msra.mxu0 0.0
    %1142 = vmatprep.subr.mxu0 0.0
    %1143 = vmatpush1.msra.mxu0 0.0
    %1144 = vmatprep.subr.mxu0 0.0
    %1145 = vmatpush1.msra.mxu0 0.0
    %1146 = vmatprep.subr.mxu0 0.0
    %1147 = vmatpush1.msra.mxu0 0.0
    %1148 = vmatprep.subr.mxu0 0.0
    %1149 = vmatpush1.msra.mxu0 0.0
    %1150 = vmatprep.subr.mxu0 0.0
    %1151 = vmatpush1.msra.mxu0 0.0
    %1152 = vmatprep.subr.mxu0 0.0
    %1153 = vmatpush1.msra.mxu0 0.0
    %1154 = vmatprep.subr.mxu0 0.0
    %1155 = vmatpush1.msra.mxu0 0.0
    %1156 = vmatprep.subr.mxu0 0.0
    %1157 = vmatpush1.msra.mxu0 0.0
    %1158 = vmatprep.subr.mxu0 0.0
    %1159 = vmatpush1.msra.mxu0 0.0
    %1160 = vmatprep.subr.mxu0 0.0
    %1161 = vmatpush1.msra.mxu0 0.0
    %1162 = vmatprep.subr.mxu0 0.0
    %1163 = vmatpush1.msra.mxu0 0.0
    %1164 = vmatprep.subr.mxu0 0.0
    %1165 = vmatpush1.msra.mxu0 0.0
    %1166 = vmatprep.subr.mxu0 0.0
    %1167 = vmatpush1.msra.mxu0 0.0
    %1168 = vmatprep.mubr.f32.mxu0 0.0
    %1169 = vmatmul.mubr.f32.gmra.mrb[0].mxu0 %v39
    %v1170 = vpop.f32.mrb[0].mxu0
    %v1171 = vadd.f32 %v1102, %v1170
    %v1172 = vpop.f32.mrb[0].mxu0
    %1173 = vmatprep.mubr.f32.mxu0 0.0
    %1174 = vmatmul.mubr.f32.gmra.mrb[0].mxu0 %v42
    %v1175 = vpop.f32.mrb[0].mxu0
    %v1176 = vadd.f32 %v1102, %v1175
    %v1177 = vpop.f32.mrb[0].mxu0
    %1178 = vdwg.mxu0
    %s1179 = scalar_lea.vmem %s3, 288
    %v1180 = vld [vmem:[%s1179] sm:$0xff]
    %v1181 = vld [vmem:[%s1179 + $0x8] sm:$0xff]
    %v1182 = vld [vmem:[%s1179 + $0x10] sm:$0xff]
    %v1183 = vld [vmem:[%s1179 + $0x18] sm:$0xff]
    %v1184 = vld [vmem:[%s1179 + $0x20] sm:$0xff]
    %v1185 = vld [vmem:[%s1179 + $0x28] sm:$0xff]
    %v1186 = vld [vmem:[%s1179 + $0x30] sm:$0xff]
    %v1187 = vld [vmem:[%s1179 + $0x38] sm:$0xff]
    %v1188 = vld [vmem:[%s1179 + $0x40] sm:$0x3]
    %v1190 = vsel %vm317, %v1089, 0
    %v1193 = vsel %vm317, %v1090, 0
    %v1196 = vsel %vm324, %v1188, 0
    %1198 = vmatprep.subr.mxu0 0.0
    %1199 = vmatpush1.msra.mxu0 %v1180
    %1200 = vmatprep.subr.mxu0 0.0
    %1201 = vmatpush1.msra.mxu0 %v1181
    %1202 = vmatprep.subr.mxu0 0.0
    %1203 = vmatpush1.msra.mxu0 %v1182
    %1204 = vmatprep.subr.mxu0 0.0
    %1205 = vmatpush1.msra.mxu0 %v1183
    %1206 = vmatprep.subr.mxu0 0.0
    %1207 = vmatpush1.msra.mxu0 %v1184
    %1208 = vmatprep.subr.mxu0 0.0
    %1209 = vmatpush1.msra.mxu0 %v1185
    %1210 = vmatprep.subr.mxu0 0.0
    %1211 = vmatpush1.msra.mxu0 %v1186
    %1212 = vmatprep.subr.mxu0 0.0
    %1213 = vmatpush1.msra.mxu0 %v1187
    %1214 = vmatprep.subr.mxu0 0.0
    %1215 = vmatpush1.msra.mxu0 %v1196
    %1216 = vmatprep.subr.mxu0 0.0
    %1217 = vmatpush1.msra.mxu0 0.0
    %1218 = vmatprep.subr.mxu0 0.0
    %1219 = vmatpush1.msra.mxu0 0.0
    %1220 = vmatprep.subr.mxu0 0.0
    %1221 = vmatpush1.msra.mxu0 0.0
    %1222 = vmatprep.subr.mxu0 0.0
    %1223 = vmatpush1.msra.mxu0 0.0
    %1224 = vmatprep.subr.mxu0 0.0
    %1225 = vmatpush1.msra.mxu0 0.0
    %1226 = vmatprep.subr.mxu0 0.0
    %1227 = vmatpush1.msra.mxu0 0.0
    %1228 = vmatprep.subr.mxu0 0.0
    %1229 = vmatpush1.msra.mxu0 0.0
    %1230 = vmatprep.subr.mxu0 0.0
    %1231 = vmatpush1.msra.mxu0 0.0
    %1232 = vmatprep.subr.mxu0 0.0
    %1233 = vmatpush1.msra.mxu0 0.0
    %1234 = vmatprep.subr.mxu0 0.0
    %1235 = vmatpush1.msra.mxu0 0.0
    %1236 = vmatprep.subr.mxu0 0.0
    %1237 = vmatpush1.msra.mxu0 0.0
    %1238 = vmatprep.subr.mxu0 0.0
    %1239 = vmatpush1.msra.mxu0 0.0
    %1240 = vmatprep.subr.mxu0 0.0
    %1241 = vmatpush1.msra.mxu0 0.0
    %1242 = vmatprep.subr.mxu0 0.0
    %1243 = vmatpush1.msra.mxu0 0.0
    %1244 = vmatprep.subr.mxu0 0.0
    %1245 = vmatpush1.msra.mxu0 0.0
    %1246 = vmatprep.subr.mxu0 0.0
    %1247 = vmatpush1.msra.mxu0 0.0
    %1248 = vmatprep.subr.mxu0 0.0
    %1249 = vmatpush1.msra.mxu0 0.0
    %1250 = vmatprep.subr.mxu0 0.0
    %1251 = vmatpush1.msra.mxu0 0.0
    %1252 = vmatprep.subr.mxu0 0.0
    %1253 = vmatpush1.msra.mxu0 0.0
    %1254 = vmatprep.subr.mxu0 0.0
    %1255 = vmatpush1.msra.mxu0 0.0
    %1256 = vmatprep.subr.mxu0 0.0
    %1257 = vmatpush1.msra.mxu0 0.0
    %1258 = vmatprep.subr.mxu0 0.0
    %1259 = vmatpush1.msra.mxu0 0.0
    %1260 = vmatprep.subr.mxu0 0.0
    %1261 = vmatpush1.msra.mxu0 0.0
    %1262 = vmatprep.mubr.f32.mxu0 0.0
    %1263 = vmatmul.mubr.f32.gmra.mrb[0].mxu0 %v1190
    %v1264 = vpop.f32.mrb[0].mxu0
    %v1265 = vadd.f32 0.0, %v1264
    %v1266 = vpop.f32.mrb[0].mxu0
    %1267 = vmatprep.mubr.f32.mxu0 0.0
    %1268 = vmatmul.mubr.f32.gmra.mrb[0].mxu0 %v1193
    %v1269 = vpop.f32.mrb[0].mxu0
    %v1270 = vadd.f32 0.0, %v1269
    %v1271 = vpop.f32.mrb[0].mxu0
    %1272 = vdwg.mxu0
    %v1273 = vadd.f32 %v1171, %v1265
    %v1274 = vadd.f32 %v1176, %v1270
    %v1275 = vmax.f32 %v1273, 0.0
    %v1276 = vmax.f32 %v1274, 0.0
    %s1277 = scalar_lea.vmem %s4, 512
    %v1278 = vld [vmem:[%s1277] sm:$0xff]
    %v1279 = vld [vmem:[%s1277 + $0x8] sm:$0xff]
    %v1280 = vld [vmem:[%s1277 + $0x10] sm:$0xff]
    %v1281 = vld [vmem:[%s1277 + $0x18] sm:$0xff]
    %v1282 = vld [vmem:[%s1277 + $0x20] sm:$0xff]
    %v1283 = vld [vmem:[%s1277 + $0x28] sm:$0xff]
    %v1284 = vld [vmem:[%s1277 + $0x30] sm:$0xff]
    %v1285 = vld [vmem:[%s1277 + $0x38] sm:$0xff]
    %v1286 = vld [vmem:[%s1277 + $0x40] sm:$0xff]
    %v1287 = vld [vmem:[%s1277 + $0x48] sm:$0xff]
    %v1288 = vld [vmem:[%s1277 + $0x50] sm:$0xff]
    %v1289 = vld [vmem:[%s1277 + $0x58] sm:$0xff]
    %v1290 = vld [vmem:[%s1277 + $0x60] sm:$0xff]
    %v1291 = vld [vmem:[%s1277 + $0x68] sm:$0xff]
    %v1292 = vld [vmem:[%s1277 + $0x70] sm:$0xff]
    %v1293 = vld [vmem:[%s1277 + $0x78] sm:$0xff]
    %1294 = vmatprep.subr.mxu0 0.0
    %1295 = vmatpush1.msra.mxu0 %v1278
    %1296 = vmatprep.subr.mxu0 0.0
    %1297 = vmatpush1.msra.mxu0 %v1279
    %1298 = vmatprep.subr.mxu0 0.0
    %1299 = vmatpush1.msra.mxu0 %v1280
    %1300 = vmatprep.subr.mxu0 0.0
    %1301 = vmatpush1.msra.mxu0 %v1281
    %1302 = vmatprep.subr.mxu0 0.0
    %1303 = vmatpush1.msra.mxu0 %v1282
    %1304 = vmatprep.subr.mxu0 0.0
    %1305 = vmatpush1.msra.mxu0 %v1283
    %1306 = vmatprep.subr.mxu0 0.0
    %1307 = vmatpush1.msra.mxu0 %v1284
    %1308 = vmatprep.subr.mxu0 0.0
    %1309 = vmatpush1.msra.mxu0 %v1285
    %1310 = vmatprep.subr.mxu0 0.0
    %1311 = vmatpush1.msra.mxu0 %v1286
    %1312 = vmatprep.subr.mxu0 0.0
    %1313 = vmatpush1.msra.mxu0 %v1287
    %1314 = vmatprep.subr.mxu0 0.0
    %1315 = vmatpush1.msra.mxu0 %v1288
    %1316 = vmatprep.subr.mxu0 0.0
    %1317 = vmatpush1.msra.mxu0 %v1289
    %1318 = vmatprep.subr.mxu0 0.0
    %1319 = vmatpush1.msra.mxu0 %v1290
    %1320 = vmatprep.subr.mxu0 0.0
    %1321 = vmatpush1.msra.mxu0 %v1291
    %1322 = vmatprep.subr.mxu0 0.0
    %1323 = vmatpush1.msra.mxu0 %v1292
    %1324 = vmatprep.subr.mxu0 0.0
    %1325 = vmatpush1.msra.mxu0 %v1293
    %1326 = vmatprep.subr.mxu0 0.0
    %1327 = vmatpush1.msra.mxu0 0.0
    %1328 = vmatprep.subr.mxu0 0.0
    %1329 = vmatpush1.msra.mxu0 0.0
    %1330 = vmatprep.subr.mxu0 0.0
    %1331 = vmatpush1.msra.mxu0 0.0
    %1332 = vmatprep.subr.mxu0 0.0
    %1333 = vmatpush1.msra.mxu0 0.0
    %1334 = vmatprep.subr.mxu0 0.0
    %1335 = vmatpush1.msra.mxu0 0.0
    %1336 = vmatprep.subr.mxu0 0.0
    %1337 = vmatpush1.msra.mxu0 0.0
    %1338 = vmatprep.subr.mxu0 0.0
    %1339 = vmatpush1.msra.mxu0 0.0
    %1340 = vmatprep.subr.mxu0 0.0
    %1341 = vmatpush1.msra.mxu0 0.0
    %1342 = vmatprep.subr.mxu0 0.0
    %1343 = vmatpush1.msra.mxu0 0.0
    %1344 = vmatprep.subr.mxu0 0.0
    %1345 = vmatpush1.msra.mxu0 0.0
    %1346 = vmatprep.subr.mxu0 0.0
    %1347 = vmatpush1.msra.mxu0 0.0
    %1348 = vmatprep.subr.mxu0 0.0
    %1349 = vmatpush1.msra.mxu0 0.0
    %1350 = vmatprep.subr.mxu0 0.0
    %1351 = vmatpush1.msra.mxu0 0.0
    %1352 = vmatprep.subr.mxu0 0.0
    %1353 = vmatpush1.msra.mxu0 0.0
    %1354 = vmatprep.subr.mxu0 0.0
    %1355 = vmatpush1.msra.mxu0 0.0
    %1356 = vmatprep.subr.mxu0 0.0
    %1357 = vmatpush1.msra.mxu0 0.0
    %1358 = vmatprep.mubr.f32.mxu0 0.0
    %1359 = vmatmul.mubr.f32.gmra.mrb[0].mxu0 %v1275
    %v1360 = vpop.f32.mrb[0].mxu0
    %v1361 = vadd.f32 0.0, %v1360
    %v1362 = vpop.f32.mrb[0].mxu0
    %1363 = vmatprep.mubr.f32.mxu0 0.0
    %1364 = vmatmul.mubr.f32.gmra.mrb[0].mxu0 %v1276
    %v1365 = vpop.f32.mrb[0].mxu0
    %v1366 = vadd.f32 0.0, %v1365
    %v1367 = vpop.f32.mrb[0].mxu0
    %1368 = vdwg.mxu0
    %v1369 = vadd.f32 %v1089, %v1361
    %v1370 = vadd.f32 %v1090, %v1366
    %s1371 = scalar_lea.vmem %s5, 4
    %v1372 = vld [vmem:[%s1371] sm:$0x1]
    %v1374 = vlaneseq
    %v1375 = vshrl.u32 %v1374, 7
    %v1376 = vsub.s32 0, %v1375
    %v1377 = vrot.slane %v1372, %v1376
    %v1379 = vadd.f32 %v1369, %v1377
    %v1380 = vadd.f32 %v1370, %v1377
    %s1381 = scalar_lea.vmem %s1, 160
    %v1382 = vld [vmem:[%s1381] sm:$0xff]
    %v1383 = vld [vmem:[%s1381 + $0x8] sm:$0xff]
    %v1384 = vld [vmem:[%s1381 + $0x10] sm:$0xff]
    %v1385 = vld [vmem:[%s1381 + $0x18] sm:$0xff]
    %s1386 = scalar_lea.vmem %s2, 5
    %v1387 = vld [vmem:[%s1386] sm:$0x1]
    %v1389 = vlaneseq
    %v1390 = vshrl.u32 %v1389, 7
    %v1391 = vsub.s32 0, %v1390
    %v1392 = vrot.slane %v1387, %v1391
    %1394 = vmatprep.subr.mxu0 0.0
    %1395 = vmatpush1.msra.mxu0 %v1382
    %1396 = vmatprep.subr.mxu0 0.0
    %1397 = vmatpush1.msra.mxu0 %v1383
    %1398 = vmatprep.subr.mxu0 0.0
    %1399 = vmatpush1.msra.mxu0 %v1384
    %1400 = vmatprep.subr.mxu0 0.0
    %1401 = vmatpush1.msra.mxu0 %v1385
    %1402 = vmatprep.subr.mxu0 0.0
    %1403 = vmatpush1.msra.mxu0 0.0
    %1404 = vmatprep.subr.mxu0 0.0
    %1405 = vmatpush1.msra.mxu0 0.0
    %1406 = vmatprep.subr.mxu0 0.0
    %1407 = vmatpush1.msra.mxu0 0.0
    %1408 = vmatprep.subr.mxu0 0.0
    %1409 = vmatpush1.msra.mxu0 0.0
    %1410 = vmatprep.subr.mxu0 0.0
    %1411 = vmatpush1.msra.mxu0 0.0
    %1412 = vmatprep.subr.mxu0 0.0
    %1413 = vmatpush1.msra.mxu0 0.0
    %1414 = vmatprep.subr.mxu0 0.0
    %1415 = vmatpush1.msra.mxu0 0.0
    %1416 = vmatprep.subr.mxu0 0.0
    %1417 = vmatpush1.msra.mxu0 0.0
    %1418 = vmatprep.subr.mxu0 0.0
    %1419 = vmatpush1.msra.mxu0 0.0
    %1420 = vmatprep.subr.mxu0 0.0
    %1421 = vmatpush1.msra.mxu0 0.0
    %1422 = vmatprep.subr.mxu0 0.0
    %1423 = vmatpush1.msra.mxu0 0.0
    %1424 = vmatprep.subr.mxu0 0.0
    %1425 = vmatpush1.msra.mxu0 0.0
    %1426 = vmatprep.subr.mxu0 0.0
    %1427 = vmatpush1.msra.mxu0 0.0
    %1428 = vmatprep.subr.mxu0 0.0
    %1429 = vmatpush1.msra.mxu0 0.0
    %1430 = vmatprep.subr.mxu0 0.0
    %1431 = vmatpush1.msra.mxu0 0.0
    %1432 = vmatprep.subr.mxu0 0.0
    %1433 = vmatpush1.msra.mxu0 0.0
    %1434 = vmatprep.subr.mxu0 0.0
    %1435 = vmatpush1.msra.mxu0 0.0
    %1436 = vmatprep.subr.mxu0 0.0
    %1437 = vmatpush1.msra.mxu0 0.0
    %1438 = vmatprep.subr.mxu0 0.0
    %1439 = vmatpush1.msra.mxu0 0.0
    %1440 = vmatprep.subr.mxu0 0.0
    %1441 = vmatpush1.msra.mxu0 0.0
    %1442 = vmatprep.subr.mxu0 0.0
    %1443 = vmatpush1.msra.mxu0 0.0
    %1444 = vmatprep.subr.mxu0 0.0
    %1445 = vmatpush1.msra.mxu0 0.0
    %1446 = vmatprep.subr.mxu0 0.0
    %1447 = vmatpush1.msra.mxu0 0.0
    %1448 = vmatprep.subr.mxu0 0.0
    %1449 = vmatpush1.msra.mxu0 0.0
    %1450 = vmatprep.subr.mxu0 0.0
    %1451 = vmatpush1.msra.mxu0 0.0
    %1452 = vmatprep.subr.mxu0 0.0
    %1453 = vmatpush1.msra.mxu0 0.0
    %1454 = vmatprep.subr.mxu0 0.0
    %1455 = vmatpush1.msra.mxu0 0.0
    %1456 = vmatprep.subr.mxu0 0.0
    %1457 = vmatpush1.msra.mxu0 0.0
    %1458 = vmatprep.mubr.f32.mxu0 0.0
    %1459 = vmatmul.mubr.f32.gmra.mrb[0].mxu0 %v39
    %v1460 = vpop.f32.mrb[0].mxu0
    %v1461 = vadd.f32 %v1392, %v1460
    %v1462 = vpop.f32.mrb[0].mxu0
    %1463 = vmatprep.mubr.f32.mxu0 0.0
    %1464 = vmatmul.mubr.f32.gmra.mrb[0].mxu0 %v42
    %v1465 = vpop.f32.mrb[0].mxu0
    %v1466 = vadd.f32 %v1392, %v1465
    %v1467 = vpop.f32.mrb[0].mxu0
    %1468 = vdwg.mxu0
    %s1469 = scalar_lea.vmem %s3, 360
    %v1470 = vld [vmem:[%s1469] sm:$0xff]
    %v1471 = vld [vmem:[%s1469 + $0x8] sm:$0xff]
    %v1472 = vld [vmem:[%s1469 + $0x10] sm:$0xff]
    %v1473 = vld [vmem:[%s1469 + $0x18] sm:$0xff]
    %v1474 = vld [vmem:[%s1469 + $0x20] sm:$0xff]
    %v1475 = vld [vmem:[%s1469 + $0x28] sm:$0xff]
    %v1476 = vld [vmem:[%s1469 + $0x30] sm:$0xff]
    %v1477 = vld [vmem:[%s1469 + $0x38] sm:$0xff]
    %v1478 = vld [vmem:[%s1469 + $0x40] sm:$0x3]
    %v1480 = vsel %vm317, %v1379, 0
    %v1483 = vsel %vm317, %v1380, 0
    %v1486 = vsel %vm324, %v1478, 0
    %1488 = vmatprep.subr.mxu0 0.0
    %1489 = vmatpush1.msra.mxu0 %v1470
    %1490 = vmatprep.subr.mxu0 0.0
    %1491 = vmatpush1.msra.mxu0 %v1471
    %1492 = vmatprep.subr.mxu0 0.0
    %1493 = vmatpush1.msra.mxu0 %v1472
    %1494 = vmatprep.subr.mxu0 0.0
    %1495 = vmatpush1.msra.mxu0 %v1473
    %1496 = vmatprep.subr.mxu0 0.0
    %1497 = vmatpush1.msra.mxu0 %v1474
    %1498 = vmatprep.subr.mxu0 0.0
    %1499 = vmatpush1.msra.mxu0 %v1475
    %1500 = vmatprep.subr.mxu0 0.0
    %1501 = vmatpush1.msra.mxu0 %v1476
    %1502 = vmatprep.subr.mxu0 0.0
    %1503 = vmatpush1.msra.mxu0 %v1477
    %1504 = vmatprep.subr.mxu0 0.0
    %1505 = vmatpush1.msra.mxu0 %v1486
    %1506 = vmatprep.subr.mxu0 0.0
    %1507 = vmatpush1.msra.mxu0 0.0
    %1508 = vmatprep.subr.mxu0 0.0
    %1509 = vmatpush1.msra.mxu0 0.0
    %1510 = vmatprep.subr.mxu0 0.0
    %1511 = vmatpush1.msra.mxu0 0.0
    %1512 = vmatprep.subr.mxu0 0.0
    %1513 = vmatpush1.msra.mxu0 0.0
    %1514 = vmatprep.subr.mxu0 0.0
    %1515 = vmatpush1.msra.mxu0 0.0
    %1516 = vmatprep.subr.mxu0 0.0
    %1517 = vmatpush1.msra.mxu0 0.0
    %1518 = vmatprep.subr.mxu0 0.0
    %1519 = vmatpush1.msra.mxu0 0.0
    %1520 = vmatprep.subr.mxu0 0.0
    %1521 = vmatpush1.msra.mxu0 0.0
    %1522 = vmatprep.subr.mxu0 0.0
    %1523 = vmatpush1.msra.mxu0 0.0
    %1524 = vmatprep.subr.mxu0 0.0
    %1525 = vmatpush1.msra.mxu0 0.0
    %1526 = vmatprep.subr.mxu0 0.0
    %1527 = vmatpush1.msra.mxu0 0.0
    %1528 = vmatprep.subr.mxu0 0.0
    %1529 = vmatpush1.msra.mxu0 0.0
    %1530 = vmatprep.subr.mxu0 0.0
    %1531 = vmatpush1.msra.mxu0 0.0
    %1532 = vmatprep.subr.mxu0 0.0
    %1533 = vmatpush1.msra.mxu0 0.0
    %1534 = vmatprep.subr.mxu0 0.0
    %1535 = vmatpush1.msra.mxu0 0.0
    %1536 = vmatprep.subr.mxu0 0.0
    %1537 = vmatpush1.msra.mxu0 0.0
    %1538 = vmatprep.subr.mxu0 0.0
    %1539 = vmatpush1.msra.mxu0 0.0
    %1540 = vmatprep.subr.mxu0 0.0
    %1541 = vmatpush1.msra.mxu0 0.0
    %1542 = vmatprep.subr.mxu0 0.0
    %1543 = vmatpush1.msra.mxu0 0.0
    %1544 = vmatprep.subr.mxu0 0.0
    %1545 = vmatpush1.msra.mxu0 0.0
    %1546 = vmatprep.subr.mxu0 0.0
    %1547 = vmatpush1.msra.mxu0 0.0
    %1548 = vmatprep.subr.mxu0 0.0
    %1549 = vmatpush1.msra.mxu0 0.0
    %1550 = vmatprep.subr.mxu0 0.0
    %1551 = vmatpush1.msra.mxu0 0.0
    %1552 = vmatprep.mubr.f32.mxu0 0.0
    %1553 = vmatmul.mubr.f32.gmra.mrb[0].mxu0 %v1480
    %v1554 = vpop.f32.mrb[0].mxu0
    %v1555 = vadd.f32 0.0, %v1554
    %v1556 = vpop.f32.mrb[0].mxu0
    %1557 = vmatprep.mubr.f32.mxu0 0.0
    %1558 = vmatmul.mubr.f32.gmra.mrb[0].mxu0 %v1483
    %v1559 = vpop.f32.mrb[0].mxu0
    %v1560 = vadd.f32 0.0, %v1559
    %v1561 = vpop.f32.mrb[0].mxu0
    %1562 = vdwg.mxu0
    %v1563 = vadd.f32 %v1461, %v1555
    %v1564 = vadd.f32 %v1466, %v1560
    %v1565 = vmax.f32 %v1563, 0.0
    %v1566 = vmax.f32 %v1564, 0.0
    %s1567 = scalar_lea.vmem %s4, 640
    %v1568 = vld [vmem:[%s1567] sm:$0xff]
    %v1569 = vld [vmem:[%s1567 + $0x8] sm:$0xff]
    %v1570 = vld [vmem:[%s1567 + $0x10] sm:$0xff]
    %v1571 = vld [vmem:[%s1567 + $0x18] sm:$0xff]
    %v1572 = vld [vmem:[%s1567 + $0x20] sm:$0xff]
    %v1573 = vld [vmem:[%s1567 + $0x28] sm:$0xff]
    %v1574 = vld [vmem:[%s1567 + $0x30] sm:$0xff]
    %v1575 = vld [vmem:[%s1567 + $0x38] sm:$0xff]
    %v1576 = vld [vmem:[%s1567 + $0x40] sm:$0xff]
    %v1577 = vld [vmem:[%s1567 + $0x48] sm:$0xff]
    %v1578 = vld [vmem:[%s1567 + $0x50] sm:$0xff]
    %v1579 = vld [vmem:[%s1567 + $0x58] sm:$0xff]
    %v1580 = vld [vmem:[%s1567 + $0x60] sm:$0xff]
    %v1581 = vld [vmem:[%s1567 + $0x68] sm:$0xff]
    %v1582 = vld [vmem:[%s1567 + $0x70] sm:$0xff]
    %v1583 = vld [vmem:[%s1567 + $0x78] sm:$0xff]
    %1584 = vmatprep.subr.mxu0 0.0
    %1585 = vmatpush1.msra.mxu0 %v1568
    %1586 = vmatprep.subr.mxu0 0.0
    %1587 = vmatpush1.msra.mxu0 %v1569
    %1588 = vmatprep.subr.mxu0 0.0
    %1589 = vmatpush1.msra.mxu0 %v1570
    %1590 = vmatprep.subr.mxu0 0.0
    %1591 = vmatpush1.msra.mxu0 %v1571
    %1592 = vmatprep.subr.mxu0 0.0
    %1593 = vmatpush1.msra.mxu0 %v1572
    %1594 = vmatprep.subr.mxu0 0.0
    %1595 = vmatpush1.msra.mxu0 %v1573
    %1596 = vmatprep.subr.mxu0 0.0
    %1597 = vmatpush1.msra.mxu0 %v1574
    %1598 = vmatprep.subr.mxu0 0.0
    %1599 = vmatpush1.msra.mxu0 %v1575
    %1600 = vmatprep.subr.mxu0 0.0
    %1601 = vmatpush1.msra.mxu0 %v1576
    %1602 = vmatprep.subr.mxu0 0.0
    %1603 = vmatpush1.msra.mxu0 %v1577
    %1604 = vmatprep.subr.mxu0 0.0
    %1605 = vmatpush1.msra.mxu0 %v1578
    %1606 = vmatprep.subr.mxu0 0.0
    %1607 = vmatpush1.msra.mxu0 %v1579
    %1608 = vmatprep.subr.mxu0 0.0
    %1609 = vmatpush1.msra.mxu0 %v1580
    %1610 = vmatprep.subr.mxu0 0.0
    %1611 = vmatpush1.msra.mxu0 %v1581
    %1612 = vmatprep.subr.mxu0 0.0
    %1613 = vmatpush1.msra.mxu0 %v1582
    %1614 = vmatprep.subr.mxu0 0.0
    %1615 = vmatpush1.msra.mxu0 %v1583
    %1616 = vmatprep.subr.mxu0 0.0
    %1617 = vmatpush1.msra.mxu0 0.0
    %1618 = vmatprep.subr.mxu0 0.0
    %1619 = vmatpush1.msra.mxu0 0.0
    %1620 = vmatprep.subr.mxu0 0.0
    %1621 = vmatpush1.msra.mxu0 0.0
    %1622 = vmatprep.subr.mxu0 0.0
    %1623 = vmatpush1.msra.mxu0 0.0
    %1624 = vmatprep.subr.mxu0 0.0
    %1625 = vmatpush1.msra.mxu0 0.0
    %1626 = vmatprep.subr.mxu0 0.0
    %1627 = vmatpush1.msra.mxu0 0.0
    %1628 = vmatprep.subr.mxu0 0.0
    %1629 = vmatpush1.msra.mxu0 0.0
    %1630 = vmatprep.subr.mxu0 0.0
    %1631 = vmatpush1.msra.mxu0 0.0
    %1632 = vmatprep.subr.mxu0 0.0
    %1633 = vmatpush1.msra.mxu0 0.0
    %1634 = vmatprep.subr.mxu0 0.0
    %1635 = vmatpush1.msra.mxu0 0.0
    %1636 = vmatprep.subr.mxu0 0.0
    %1637 = vmatpush1.msra.mxu0 0.0
    %1638 = vmatprep.subr.mxu0 0.0
    %1639 = vmatpush1.msra.mxu0 0.0
    %1640 = vmatprep.subr.mxu0 0.0
    %1641 = vmatpush1.msra.mxu0 0.0
    %1642 = vmatprep.subr.mxu0 0.0
    %1643 = vmatpush1.msra.mxu0 0.0
    %1644 = vmatprep.subr.mxu0 0.0
    %1645 = vmatpush1.msra.mxu0 0.0
    %1646 = vmatprep.subr.mxu0 0.0
    %1647 = vmatpush1.msra.mxu0 0.0
    %1648 = vmatprep.mubr.f32.mxu0 0.0
    %1649 = vmatmul.mubr.f32.gmra.mrb[0].mxu0 %v1565
    %v1650 = vpop.f32.mrb[0].mxu0
    %v1651 = vadd.f32 0.0, %v1650
    %v1652 = vpop.f32.mrb[0].mxu0
    %1653 = vmatprep.mubr.f32.mxu0 0.0
    %1654 = vmatmul.mubr.f32.gmra.mrb[0].mxu0 %v1566
    %v1655 = vpop.f32.mrb[0].mxu0
    %v1656 = vadd.f32 0.0, %v1655
    %v1657 = vpop.f32.mrb[0].mxu0
    %1658 = vdwg.mxu0
    %v1659 = vadd.f32 %v1379, %v1651
    %v1660 = vadd.f32 %v1380, %v1656
    %s1661 = scalar_lea.vmem %s5, 5
    %v1662 = vld [vmem:[%s1661] sm:$0x1]
    %v1664 = vlaneseq
    %v1665 = vshrl.u32 %v1664, 7
    %v1666 = vsub.s32 0, %v1665
    %v1667 = vrot.slane %v1662, %v1666
    %v1669 = vadd.f32 %v1659, %v1667
    %v1670 = vadd.f32 %v1660, %v1667
    %s1671 = scalar_lea.vmem %s1, 192
    %v1672 = vld [vmem:[%s1671] sm:$0xff]
    %v1673 = vld [vmem:[%s1671 + $0x8] sm:$0xff]
    %v1674 = vld [vmem:[%s1671 + $0x10] sm:$0xff]
    %v1675 = vld [vmem:[%s1671 + $0x18] sm:$0xff]
    %s1676 = scalar_lea.vmem %s2, 6
    %v1677 = vld [vmem:[%s1676] sm:$0x1]
    %v1679 = vlaneseq
    %v1680 = vshrl.u32 %v1679, 7
    %v1681 = vsub.s32 0, %v1680
    %v1682 = vrot.slane %v1677, %v1681
    %1684 = vmatprep.subr.mxu0 0.0
    %1685 = vmatpush1.msra.mxu0 %v1672
    %1686 = vmatprep.subr.mxu0 0.0
    %1687 = vmatpush1.msra.mxu0 %v1673
    %1688 = vmatprep.subr.mxu0 0.0
    %1689 = vmatpush1.msra.mxu0 %v1674
    %1690 = vmatprep.subr.mxu0 0.0
    %1691 = vmatpush1.msra.mxu0 %v1675
    %1692 = vmatprep.subr.mxu0 0.0
    %1693 = vmatpush1.msra.mxu0 0.0
    %1694 = vmatprep.subr.mxu0 0.0
    %1695 = vmatpush1.msra.mxu0 0.0
    %1696 = vmatprep.subr.mxu0 0.0
    %1697 = vmatpush1.msra.mxu0 0.0
    %1698 = vmatprep.subr.mxu0 0.0
    %1699 = vmatpush1.msra.mxu0 0.0
    %1700 = vmatprep.subr.mxu0 0.0
    %1701 = vmatpush1.msra.mxu0 0.0
    %1702 = vmatprep.subr.mxu0 0.0
    %1703 = vmatpush1.msra.mxu0 0.0
    %1704 = vmatprep.subr.mxu0 0.0
    %1705 = vmatpush1.msra.mxu0 0.0
    %1706 = vmatprep.subr.mxu0 0.0
    %1707 = vmatpush1.msra.mxu0 0.0
    %1708 = vmatprep.subr.mxu0 0.0
    %1709 = vmatpush1.msra.mxu0 0.0
    %1710 = vmatprep.subr.mxu0 0.0
    %1711 = vmatpush1.msra.mxu0 0.0
    %1712 = vmatprep.subr.mxu0 0.0
    %1713 = vmatpush1.msra.mxu0 0.0
    %1714 = vmatprep.subr.mxu0 0.0
    %1715 = vmatpush1.msra.mxu0 0.0
    %1716 = vmatprep.subr.mxu0 0.0
    %1717 = vmatpush1.msra.mxu0 0.0
    %1718 = vmatprep.subr.mxu0 0.0
    %1719 = vmatpush1.msra.mxu0 0.0
    %1720 = vmatprep.subr.mxu0 0.0
    %1721 = vmatpush1.msra.mxu0 0.0
    %1722 = vmatprep.subr.mxu0 0.0
    %1723 = vmatpush1.msra.mxu0 0.0
    %1724 = vmatprep.subr.mxu0 0.0
    %1725 = vmatpush1.msra.mxu0 0.0
    %1726 = vmatprep.subr.mxu0 0.0
    %1727 = vmatpush1.msra.mxu0 0.0
    %1728 = vmatprep.subr.mxu0 0.0
    %1729 = vmatpush1.msra.mxu0 0.0
    %1730 = vmatprep.subr.mxu0 0.0
    %1731 = vmatpush1.msra.mxu0 0.0
    %1732 = vmatprep.subr.mxu0 0.0
    %1733 = vmatpush1.msra.mxu0 0.0
    %1734 = vmatprep.subr.mxu0 0.0
    %1735 = vmatpush1.msra.mxu0 0.0
    %1736 = vmatprep.subr.mxu0 0.0
    %1737 = vmatpush1.msra.mxu0 0.0
    %1738 = vmatprep.subr.mxu0 0.0
    %1739 = vmatpush1.msra.mxu0 0.0
    %1740 = vmatprep.subr.mxu0 0.0
    %1741 = vmatpush1.msra.mxu0 0.0
    %1742 = vmatprep.subr.mxu0 0.0
    %1743 = vmatpush1.msra.mxu0 0.0
    %1744 = vmatprep.subr.mxu0 0.0
    %1745 = vmatpush1.msra.mxu0 0.0
    %1746 = vmatprep.subr.mxu0 0.0
    %1747 = vmatpush1.msra.mxu0 0.0
    %1748 = vmatprep.mubr.f32.mxu0 0.0
    %1749 = vmatmul.mubr.f32.gmra.mrb[0].mxu0 %v39
    %v1750 = vpop.f32.mrb[0].mxu0
    %v1751 = vadd.f32 %v1682, %v1750
    %v1752 = vpop.f32.mrb[0].mxu0
    %1753 = vmatprep.mubr.f32.mxu0 0.0
    %1754 = vmatmul.mubr.f32.gmra.mrb[0].mxu0 %v42
    %v1755 = vpop.f32.mrb[0].mxu0
    %v1756 = vadd.f32 %v1682, %v1755
    %v1757 = vpop.f32.mrb[0].mxu0
    %1758 = vdwg.mxu0
    %s1759 = scalar_lea.vmem %s3, 432
    %v1760 = vld [vmem:[%s1759] sm:$0xff]
    %v1761 = vld [vmem:[%s1759 + $0x8] sm:$0xff]
    %v1762 = vld [vmem:[%s1759 + $0x10] sm:$0xff]
    %v1763 = vld [vmem:[%s1759 + $0x18] sm:$0xff]
    %v1764 = vld [vmem:[%s1759 + $0x20] sm:$0xff]
    %v1765 = vld [vmem:[%s1759 + $0x28] sm:$0xff]
    %v1766 = vld [vmem:[%s1759 + $0x30] sm:$0xff]
    %v1767 = vld [vmem:[%s1759 + $0x38] sm:$0xff]
    %v1768 = vld [vmem:[%s1759 + $0x40] sm:$0x3]
    %v1770 = vsel %vm317, %v1669, 0
    %v1773 = vsel %vm317, %v1670, 0
    %v1776 = vsel %vm324, %v1768, 0
    %1778 = vmatprep.subr.mxu0 0.0
    %1779 = vmatpush1.msra.mxu0 %v1760
    %1780 = vmatprep.subr.mxu0 0.0
    %1781 = vmatpush1.msra.mxu0 %v1761
    %1782 = vmatprep.subr.mxu0 0.0
    %1783 = vmatpush1.msra.mxu0 %v1762
    %1784 = vmatprep.subr.mxu0 0.0
    %1785 = vmatpush1.msra.mxu0 %v1763
    %1786 = vmatprep.subr.mxu0 0.0
    %1787 = vmatpush1.msra.mxu0 %v1764
    %1788 = vmatprep.subr.mxu0 0.0
    %1789 = vmatpush1.msra.mxu0 %v1765
    %1790 = vmatprep.subr.mxu0 0.0
    %1791 = vmatpush1.msra.mxu0 %v1766
    %1792 = vmatprep.subr.mxu0 0.0
    %1793 = vmatpush1.msra.mxu0 %v1767
    %1794 = vmatprep.subr.mxu0 0.0
    %1795 = vmatpush1.msra.mxu0 %v1776
    %1796 = vmatprep.subr.mxu0 0.0
    %1797 = vmatpush1.msra.mxu0 0.0
    %1798 = vmatprep.subr.mxu0 0.0
    %1799 = vmatpush1.msra.mxu0 0.0
    %1800 = vmatprep.subr.mxu0 0.0
    %1801 = vmatpush1.msra.mxu0 0.0
    %1802 = vmatprep.subr.mxu0 0.0
    %1803 = vmatpush1.msra.mxu0 0.0
    %1804 = vmatprep.subr.mxu0 0.0
    %1805 = vmatpush1.msra.mxu0 0.0
    %1806 = vmatprep.subr.mxu0 0.0
    %1807 = vmatpush1.msra.mxu0 0.0
    %1808 = vmatprep.subr.mxu0 0.0
    %1809 = vmatpush1.msra.mxu0 0.0
    %1810 = vmatprep.subr.mxu0 0.0
    %1811 = vmatpush1.msra.mxu0 0.0
    %1812 = vmatprep.subr.mxu0 0.0
    %1813 = vmatpush1.msra.mxu0 0.0
    %1814 = vmatprep.subr.mxu0 0.0
    %1815 = vmatpush1.msra.mxu0 0.0
    %1816 = vmatprep.subr.mxu0 0.0
    %1817 = vmatpush1.msra.mxu0 0.0
    %1818 = vmatprep.subr.mxu0 0.0
    %1819 = vmatpush1.msra.mxu0 0.0
    %1820 = vmatprep.subr.mxu0 0.0
    %1821 = vmatpush1.msra.mxu0 0.0
    %1822 = vmatprep.subr.mxu0 0.0
    %1823 = vmatpush1.msra.mxu0 0.0
    %1824 = vmatprep.subr.mxu0 0.0
    %1825 = vmatpush1.msra.mxu0 0.0
    %1826 = vmatprep.subr.mxu0 0.0
    %1827 = vmatpush1.msra.mxu0 0.0
    %1828 = vmatprep.subr.mxu0 0.0
    %1829 = vmatpush1.msra.mxu0 0.0
    %1830 = vmatprep.subr.mxu0 0.0
    %1831 = vmatpush1.msra.mxu0 0.0
    %1832 = vmatprep.subr.mxu0 0.0
    %1833 = vmatpush1.msra.mxu0 0.0
    %1834 = vmatprep.subr.mxu0 0.0
    %1835 = vmatpush1.msra.mxu0 0.0
    %1836 = vmatprep.subr.mxu0 0.0
    %1837 = vmatpush1.msra.mxu0 0.0
    %1838 = vmatprep.subr.mxu0 0.0
    %1839 = vmatpush1.msra.mxu0 0.0
    %1840 = vmatprep.subr.mxu0 0.0
    %1841 = vmatpush1.msra.mxu0 0.0
    %1842 = vmatprep.mubr.f32.mxu0 0.0
    %1843 = vmatmul.mubr.f32.gmra.mrb[0].mxu0 %v1770
    %v1844 = vpop.f32.mrb[0].mxu0
    %v1845 = vadd.f32 0.0, %v1844
    %v1846 = vpop.f32.mrb[0].mxu0
    %1847 = vmatprep.mubr.f32.mxu0 0.0
    %1848 = vmatmul.mubr.f32.gmra.mrb[0].mxu0 %v1773
    %v1849 = vpop.f32.mrb[0].mxu0
    %v1850 = vadd.f32 0.0, %v1849
    %v1851 = vpop.f32.mrb[0].mxu0
    %1852 = vdwg.mxu0
    %v1853 = vadd.f32 %v1751, %v1845
    %v1854 = vadd.f32 %v1756, %v1850
    %v1855 = vmax.f32 %v1853, 0.0
    %v1856 = vmax.f32 %v1854, 0.0
    %s1857 = scalar_lea.vmem %s4, 768
    %v1858 = vld [vmem:[%s1857] sm:$0xff]
    %v1859 = vld [vmem:[%s1857 + $0x8] sm:$0xff]
    %v1860 = vld [vmem:[%s1857 + $0x10] sm:$0xff]
    %v1861 = vld [vmem:[%s1857 + $0x18] sm:$0xff]
    %v1862 = vld [vmem:[%s1857 + $0x20] sm:$0xff]
    %v1863 = vld [vmem:[%s1857 + $0x28] sm:$0xff]
    %v1864 = vld [vmem:[%s1857 + $0x30] sm:$0xff]
    %v1865 = vld [vmem:[%s1857 + $0x38] sm:$0xff]
    %v1866 = vld [vmem:[%s1857 + $0x40] sm:$0xff]
    %v1867 = vld [vmem:[%s1857 + $0x48] sm:$0xff]
    %v1868 = vld [vmem:[%s1857 + $0x50] sm:$0xff]
    %v1869 = vld [vmem:[%s1857 + $0x58] sm:$0xff]
    %v1870 = vld [vmem:[%s1857 + $0x60] sm:$0xff]
    %v1871 = vld [vmem:[%s1857 + $0x68] sm:$0xff]
    %v1872 = vld [vmem:[%s1857 + $0x70] sm:$0xff]
    %v1873 = vld [vmem:[%s1857 + $0x78] sm:$0xff]
    %1874 = vmatprep.subr.mxu0 0.0
    %1875 = vmatpush1.msra.mxu0 %v1858
    %1876 = vmatprep.subr.mxu0 0.0
    %1877 = vmatpush1.msra.mxu0 %v1859
    %1878 = vmatprep.subr.mxu0 0.0
    %1879 = vmatpush1.msra.mxu0 %v1860
    %1880 = vmatprep.subr.mxu0 0.0
    %1881 = vmatpush1.msra.mxu0 %v1861
    %1882 = vmatprep.subr.mxu0 0.0
    %1883 = vmatpush1.msra.mxu0 %v1862
    %1884 = vmatprep.subr.mxu0 0.0
    %1885 = vmatpush1.msra.mxu0 %v1863
    %1886 = vmatprep.subr.mxu0 0.0
    %1887 = vmatpush1.msra.mxu0 %v1864
    %1888 = vmatprep.subr.mxu0 0.0
    %1889 = vmatpush1.msra.mxu0 %v1865
    %1890 = vmatprep.subr.mxu0 0.0
    %1891 = vmatpush1.msra.mxu0 %v1866
    %1892 = vmatprep.subr.mxu0 0.0
    %1893 = vmatpush1.msra.mxu0 %v1867
    %1894 = vmatprep.subr.mxu0 0.0
    %1895 = vmatpush1.msra.mxu0 %v1868
    %1896 = vmatprep.subr.mxu0 0.0
    %1897 = vmatpush1.msra.mxu0 %v1869
    %1898 = vmatprep.subr.mxu0 0.0
    %1899 = vmatpush1.msra.mxu0 %v1870
    %1900 = vmatprep.subr.mxu0 0.0
    %1901 = vmatpush1.msra.mxu0 %v1871
    %1902 = vmatprep.subr.mxu0 0.0
    %1903 = vmatpush1.msra.mxu0 %v1872
    %1904 = vmatprep.subr.mxu0 0.0
    %1905 = vmatpush1.msra.mxu0 %v1873
    %1906 = vmatprep.subr.mxu0 0.0
    %1907 = vmatpush1.msra.mxu0 0.0
    %1908 = vmatprep.subr.mxu0 0.0
    %1909 = vmatpush1.msra.mxu0 0.0
    %1910 = vmatprep.subr.mxu0 0.0
    %1911 = vmatpush1.msra.mxu0 0.0
    %1912 = vmatprep.subr.mxu0 0.0
    %1913 = vmatpush1.msra.mxu0 0.0
    %1914 = vmatprep.subr.mxu0 0.0
    %1915 = vmatpush1.msra.mxu0 0.0
    %1916 = vmatprep.subr.mxu0 0.0
    %1917 = vmatpush1.msra.mxu0 0.0
    %1918 = vmatprep.subr.mxu0 0.0
    %1919 = vmatpush1.msra.mxu0 0.0
    %1920 = vmatprep.subr.mxu0 0.0
    %1921 = vmatpush1.msra.mxu0 0.0
    %1922 = vmatprep.subr.mxu0 0.0
    %1923 = vmatpush1.msra.mxu0 0.0
    %1924 = vmatprep.subr.mxu0 0.0
    %1925 = vmatpush1.msra.mxu0 0.0
    %1926 = vmatprep.subr.mxu0 0.0
    %1927 = vmatpush1.msra.mxu0 0.0
    %1928 = vmatprep.subr.mxu0 0.0
    %1929 = vmatpush1.msra.mxu0 0.0
    %1930 = vmatprep.subr.mxu0 0.0
    %1931 = vmatpush1.msra.mxu0 0.0
    %1932 = vmatprep.subr.mxu0 0.0
    %1933 = vmatpush1.msra.mxu0 0.0
    %1934 = vmatprep.subr.mxu0 0.0
    %1935 = vmatpush1.msra.mxu0 0.0
    %1936 = vmatprep.subr.mxu0 0.0
    %1937 = vmatpush1.msra.mxu0 0.0
    %1938 = vmatprep.mubr.f32.mxu0 0.0
    %1939 = vmatmul.mubr.f32.gmra.mrb[0].mxu0 %v1855
    %v1940 = vpop.f32.mrb[0].mxu0
    %v1941 = vadd.f32 0.0, %v1940
    %v1942 = vpop.f32.mrb[0].mxu0
    %1943 = vmatprep.mubr.f32.mxu0 0.0
    %1944 = vmatmul.mubr.f32.gmra.mrb[0].mxu0 %v1856
    %v1945 = vpop.f32.mrb[0].mxu0
    %v1946 = vadd.f32 0.0, %v1945
    %v1947 = vpop.f32.mrb[0].mxu0
    %1948 = vdwg.mxu0
    %v1949 = vadd.f32 %v1669, %v1941
    %v1950 = vadd.f32 %v1670, %v1946
    %s1951 = scalar_lea.vmem %s5, 6
    %v1952 = vld [vmem:[%s1951] sm:$0x1]
    %v1954 = vlaneseq
    %v1955 = vshrl.u32 %v1954, 7
    %v1956 = vsub.s32 0, %v1955
    %v1957 = vrot.slane %v1952, %v1956
    %v1959 = vadd.f32 %v1949, %v1957
    %v1960 = vadd.f32 %v1950, %v1957
    %s1961 = scalar_lea.vmem %s1, 224
    %v1962 = vld [vmem:[%s1961] sm:$0xff]
    %v1963 = vld [vmem:[%s1961 + $0x8] sm:$0xff]
    %v1964 = vld [vmem:[%s1961 + $0x10] sm:$0xff]
    %v1965 = vld [vmem:[%s1961 + $0x18] sm:$0xff]
    %s1966 = scalar_lea.vmem %s2, 7
    %v1967 = vld [vmem:[%s1966] sm:$0x1]
    %v1969 = vlaneseq
    %v1970 = vshrl.u32 %v1969, 7
    %v1971 = vsub.s32 0, %v1970
    %v1972 = vrot.slane %v1967, %v1971
    %1974 = vmatprep.subr.mxu0 0.0
    %1975 = vmatpush1.msra.mxu0 %v1962
    %1976 = vmatprep.subr.mxu0 0.0
    %1977 = vmatpush1.msra.mxu0 %v1963
    %1978 = vmatprep.subr.mxu0 0.0
    %1979 = vmatpush1.msra.mxu0 %v1964
    %1980 = vmatprep.subr.mxu0 0.0
    %1981 = vmatpush1.msra.mxu0 %v1965
    %1982 = vmatprep.subr.mxu0 0.0
    %1983 = vmatpush1.msra.mxu0 0.0
    %1984 = vmatprep.subr.mxu0 0.0
    %1985 = vmatpush1.msra.mxu0 0.0
    %1986 = vmatprep.subr.mxu0 0.0
    %1987 = vmatpush1.msra.mxu0 0.0
    %1988 = vmatprep.subr.mxu0 0.0
    %1989 = vmatpush1.msra.mxu0 0.0
    %1990 = vmatprep.subr.mxu0 0.0
    %1991 = vmatpush1.msra.mxu0 0.0
    %1992 = vmatprep.subr.mxu0 0.0
    %1993 = vmatpush1.msra.mxu0 0.0
    %1994 = vmatprep.subr.mxu0 0.0
    %1995 = vmatpush1.msra.mxu0 0.0
    %1996 = vmatprep.subr.mxu0 0.0
    %1997 = vmatpush1.msra.mxu0 0.0
    %1998 = vmatprep.subr.mxu0 0.0
    %1999 = vmatpush1.msra.mxu0 0.0
    %2000 = vmatprep.subr.mxu0 0.0
    %2001 = vmatpush1.msra.mxu0 0.0
    %2002 = vmatprep.subr.mxu0 0.0
    %2003 = vmatpush1.msra.mxu0 0.0
    %2004 = vmatprep.subr.mxu0 0.0
    %2005 = vmatpush1.msra.mxu0 0.0
    %2006 = vmatprep.subr.mxu0 0.0
    %2007 = vmatpush1.msra.mxu0 0.0
    %2008 = vmatprep.subr.mxu0 0.0
    %2009 = vmatpush1.msra.mxu0 0.0
    %2010 = vmatprep.subr.mxu0 0.0
    %2011 = vmatpush1.msra.mxu0 0.0
    %2012 = vmatprep.subr.mxu0 0.0
    %2013 = vmatpush1.msra.mxu0 0.0
    %2014 = vmatprep.subr.mxu0 0.0
    %2015 = vmatpush1.msra.mxu0 0.0
    %2016 = vmatprep.subr.mxu0 0.0
    %2017 = vmatpush1.msra.mxu0 0.0
    %2018 = vmatprep.subr.mxu0 0.0
    %2019 = vmatpush1.msra.mxu0 0.0
    %2020 = vmatprep.subr.mxu0 0.0
    %2021 = vmatpush1.msra.mxu0 0.0
    %2022 = vmatprep.subr.mxu0 0.0
    %2023 = vmatpush1.msra.mxu0 0.0
    %2024 = vmatprep.subr.mxu0 0.0
    %2025 = vmatpush1.msra.mxu0 0.0
    %2026 = vmatprep.subr.mxu0 0.0
    %2027 = vmatpush1.msra.mxu0 0.0
    %2028 = vmatprep.subr.mxu0 0.0
    %2029 = vmatpush1.msra.mxu0 0.0
    %2030 = vmatprep.subr.mxu0 0.0
    %2031 = vmatpush1.msra.mxu0 0.0
    %2032 = vmatprep.subr.mxu0 0.0
    %2033 = vmatpush1.msra.mxu0 0.0
    %2034 = vmatprep.subr.mxu0 0.0
    %2035 = vmatpush1.msra.mxu0 0.0
    %2036 = vmatprep.subr.mxu0 0.0
    %2037 = vmatpush1.msra.mxu0 0.0
    %2038 = vmatprep.mubr.f32.mxu0 0.0
    %2039 = vmatmul.mubr.f32.gmra.mrb[0].mxu0 %v39
    %v2040 = vpop.f32.mrb[0].mxu0
    %v2041 = vadd.f32 %v1972, %v2040
    %v2042 = vpop.f32.mrb[0].mxu0
    %2043 = vmatprep.mubr.f32.mxu0 0.0
    %2044 = vmatmul.mubr.f32.gmra.mrb[0].mxu0 %v42
    %v2045 = vpop.f32.mrb[0].mxu0
    %v2046 = vadd.f32 %v1972, %v2045
    %v2047 = vpop.f32.mrb[0].mxu0
    %2048 = vdwg.mxu0
    %s2049 = scalar_lea.vmem %s3, 504
    %v2050 = vld [vmem:[%s2049] sm:$0xff]
    %v2051 = vld [vmem:[%s2049 + $0x8] sm:$0xff]
    %v2052 = vld [vmem:[%s2049 + $0x10] sm:$0xff]
    %v2053 = vld [vmem:[%s2049 + $0x18] sm:$0xff]
    %v2054 = vld [vmem:[%s2049 + $0x20] sm:$0xff]
    %v2055 = vld [vmem:[%s2049 + $0x28] sm:$0xff]
    %v2056 = vld [vmem:[%s2049 + $0x30] sm:$0xff]
    %v2057 = vld [vmem:[%s2049 + $0x38] sm:$0xff]
    %v2058 = vld [vmem:[%s2049 + $0x40] sm:$0x3]
    %v2060 = vsel %vm317, %v1959, 0
    %v2063 = vsel %vm317, %v1960, 0
    %v2066 = vsel %vm324, %v2058, 0
    %2068 = vmatprep.subr.mxu0 0.0
    %2069 = vmatpush1.msra.mxu0 %v2050
    %2070 = vmatprep.subr.mxu0 0.0
    %2071 = vmatpush1.msra.mxu0 %v2051
    %2072 = vmatprep.subr.mxu0 0.0
    %2073 = vmatpush1.msra.mxu0 %v2052
    %2074 = vmatprep.subr.mxu0 0.0
    %2075 = vmatpush1.msra.mxu0 %v2053
    %2076 = vmatprep.subr.mxu0 0.0
    %2077 = vmatpush1.msra.mxu0 %v2054
    %2078 = vmatprep.subr.mxu0 0.0
    %2079 = vmatpush1.msra.mxu0 %v2055
    %2080 = vmatprep.subr.mxu0 0.0
    %2081 = vmatpush1.msra.mxu0 %v2056
    %2082 = vmatprep.subr.mxu0 0.0
    %2083 = vmatpush1.msra.mxu0 %v2057
    %2084 = vmatprep.subr.mxu0 0.0
    %2085 = vmatpush1.msra.mxu0 %v2066
    %2086 = vmatprep.subr.mxu0 0.0
    %2087 = vmatpush1.msra.mxu0 0.0
    %2088 = vmatprep.subr.mxu0 0.0
    %2089 = vmatpush1.msra.mxu0 0.0
    %2090 = vmatprep.subr.mxu0 0.0
    %2091 = vmatpush1.msra.mxu0 0.0
    %2092 = vmatprep.subr.mxu0 0.0
    %2093 = vmatpush1.msra.mxu0 0.0
    %2094 = vmatprep.subr.mxu0 0.0
    %2095 = vmatpush1.msra.mxu0 0.0
    %2096 = vmatprep.subr.mxu0 0.0
    %2097 = vmatpush1.msra.mxu0 0.0
    %2098 = vmatprep.subr.mxu0 0.0
    %2099 = vmatpush1.msra.mxu0 0.0
    %2100 = vmatprep.subr.mxu0 0.0
    %2101 = vmatpush1.msra.mxu0 0.0
    %2102 = vmatprep.subr.mxu0 0.0
    %2103 = vmatpush1.msra.mxu0 0.0
    %2104 = vmatprep.subr.mxu0 0.0
    %2105 = vmatpush1.msra.mxu0 0.0
    %2106 = vmatprep.subr.mxu0 0.0
    %2107 = vmatpush1.msra.mxu0 0.0
    %2108 = vmatprep.subr.mxu0 0.0
    %2109 = vmatpush1.msra.mxu0 0.0
    %2110 = vmatprep.subr.mxu0 0.0
    %2111 = vmatpush1.msra.mxu0 0.0
    %2112 = vmatprep.subr.mxu0 0.0
    %2113 = vmatpush1.msra.mxu0 0.0
    %2114 = vmatprep.subr.mxu0 0.0
    %2115 = vmatpush1.msra.mxu0 0.0
    %2116 = vmatprep.subr.mxu0 0.0
    %2117 = vmatpush1.msra.mxu0 0.0
    %2118 = vmatprep.subr.mxu0 0.0
    %2119 = vmatpush1.msra.mxu0 0.0
    %2120 = vmatprep.subr.mxu0 0.0
    %2121 = vmatpush1.msra.mxu0 0.0
    %2122 = vmatprep.subr.mxu0 0.0
    %2123 = vmatpush1.msra.mxu0 0.0
    %2124 = vmatprep.subr.mxu0 0.0
    %2125 = vmatpush1.msra.mxu0 0.0
    %2126 = vmatprep.subr.mxu0 0.0
    %2127 = vmatpush1.msra.mxu0 0.0
    %2128 = vmatprep.subr.mxu0 0.0
    %2129 = vmatpush1.msra.mxu0 0.0
    %2130 = vmatprep.subr.mxu0 0.0
    %2131 = vmatpush1.msra.mxu0 0.0
    %2132 = vmatprep.mubr.f32.mxu0 0.0
    %2133 = vmatmul.mubr.f32.gmra.mrb[0].mxu0 %v2060
    %v2134 = vpop.f32.mrb[0].mxu0
    %v2135 = vadd.f32 0.0, %v2134
    %v2136 = vpop.f32.mrb[0].mxu0
    %2137 = vmatprep.mubr.f32.mxu0 0.0
    %2138 = vmatmul.mubr.f32.gmra.mrb[0].mxu0 %v2063
    %v2139 = vpop.f32.mrb[0].mxu0
    %v2140 = vadd.f32 0.0, %v2139
    %v2141 = vpop.f32.mrb[0].mxu0
    %2142 = vdwg.mxu0
    %v2143 = vadd.f32 %v2041, %v2135
    %v2144 = vadd.f32 %v2046, %v2140
    %v2145 = vmax.f32 %v2143, 0.0
    %v2146 = vmax.f32 %v2144, 0.0
    %s2147 = scalar_lea.vmem %s4, 896
    %v2148 = vld [vmem:[%s2147] sm:$0xff]
    %v2149 = vld [vmem:[%s2147 + $0x8] sm:$0xff]
    %v2150 = vld [vmem:[%s2147 + $0x10] sm:$0xff]
    %v2151 = vld [vmem:[%s2147 + $0x18] sm:$0xff]
    %v2152 = vld [vmem:[%s2147 + $0x20] sm:$0xff]
    %v2153 = vld [vmem:[%s2147 + $0x28] sm:$0xff]
    %v2154 = vld [vmem:[%s2147 + $0x30] sm:$0xff]
    %v2155 = vld [vmem:[%s2147 + $0x38] sm:$0xff]
    %v2156 = vld [vmem:[%s2147 + $0x40] sm:$0xff]
    %v2157 = vld [vmem:[%s2147 + $0x48] sm:$0xff]
    %v2158 = vld [vmem:[%s2147 + $0x50] sm:$0xff]
    %v2159 = vld [vmem:[%s2147 + $0x58] sm:$0xff]
    %v2160 = vld [vmem:[%s2147 + $0x60] sm:$0xff]
    %v2161 = vld [vmem:[%s2147 + $0x68] sm:$0xff]
    %v2162 = vld [vmem:[%s2147 + $0x70] sm:$0xff]
    %v2163 = vld [vmem:[%s2147 + $0x78] sm:$0xff]
    %2164 = vmatprep.subr.mxu0 0.0
    %2165 = vmatpush1.msra.mxu0 %v2148
    %2166 = vmatprep.subr.mxu0 0.0
    %2167 = vmatpush1.msra.mxu0 %v2149
    %2168 = vmatprep.subr.mxu0 0.0
    %2169 = vmatpush1.msra.mxu0 %v2150
    %2170 = vmatprep.subr.mxu0 0.0
    %2171 = vmatpush1.msra.mxu0 %v2151
    %2172 = vmatprep.subr.mxu0 0.0
    %2173 = vmatpush1.msra.mxu0 %v2152
    %2174 = vmatprep.subr.mxu0 0.0
    %2175 = vmatpush1.msra.mxu0 %v2153
    %2176 = vmatprep.subr.mxu0 0.0
    %2177 = vmatpush1.msra.mxu0 %v2154
    %2178 = vmatprep.subr.mxu0 0.0
    %2179 = vmatpush1.msra.mxu0 %v2155
    %2180 = vmatprep.subr.mxu0 0.0
    %2181 = vmatpush1.msra.mxu0 %v2156
    %2182 = vmatprep.subr.mxu0 0.0
    %2183 = vmatpush1.msra.mxu0 %v2157
    %2184 = vmatprep.subr.mxu0 0.0
    %2185 = vmatpush1.msra.mxu0 %v2158
    %2186 = vmatprep.subr.mxu0 0.0
    %2187 = vmatpush1.msra.mxu0 %v2159
    %2188 = vmatprep.subr.mxu0 0.0
    %2189 = vmatpush1.msra.mxu0 %v2160
    %2190 = vmatprep.subr.mxu0 0.0
    %2191 = vmatpush1.msra.mxu0 %v2161
    %2192 = vmatprep.subr.mxu0 0.0
    %2193 = vmatpush1.msra.mxu0 %v2162
    %2194 = vmatprep.subr.mxu0 0.0
    %2195 = vmatpush1.msra.mxu0 %v2163
    %2196 = vmatprep.subr.mxu0 0.0
    %2197 = vmatpush1.msra.mxu0 0.0
    %2198 = vmatprep.subr.mxu0 0.0
    %2199 = vmatpush1.msra.mxu0 0.0
    %2200 = vmatprep.subr.mxu0 0.0
    %2201 = vmatpush1.msra.mxu0 0.0
    %2202 = vmatprep.subr.mxu0 0.0
    %2203 = vmatpush1.msra.mxu0 0.0
    %2204 = vmatprep.subr.mxu0 0.0
    %2205 = vmatpush1.msra.mxu0 0.0
    %2206 = vmatprep.subr.mxu0 0.0
    %2207 = vmatpush1.msra.mxu0 0.0
    %2208 = vmatprep.subr.mxu0 0.0
    %2209 = vmatpush1.msra.mxu0 0.0
    %2210 = vmatprep.subr.mxu0 0.0
    %2211 = vmatpush1.msra.mxu0 0.0
    %2212 = vmatprep.subr.mxu0 0.0
    %2213 = vmatpush1.msra.mxu0 0.0
    %2214 = vmatprep.subr.mxu0 0.0
    %2215 = vmatpush1.msra.mxu0 0.0
    %2216 = vmatprep.subr.mxu0 0.0
    %2217 = vmatpush1.msra.mxu0 0.0
    %2218 = vmatprep.subr.mxu0 0.0
    %2219 = vmatpush1.msra.mxu0 0.0
    %2220 = vmatprep.subr.mxu0 0.0
    %2221 = vmatpush1.msra.mxu0 0.0
    %2222 = vmatprep.subr.mxu0 0.0
    %2223 = vmatpush1.msra.mxu0 0.0
    %2224 = vmatprep.subr.mxu0 0.0
    %2225 = vmatpush1.msra.mxu0 0.0
    %2226 = vmatprep.subr.mxu0 0.0
    %2227 = vmatpush1.msra.mxu0 0.0
    %2228 = vmatprep.mubr.f32.mxu0 0.0
    %2229 = vmatmul.mubr.f32.gmra.mrb[0].mxu0 %v2145
    %v2230 = vpop.f32.mrb[0].mxu0
    %v2231 = vadd.f32 0.0, %v2230
    %v2232 = vpop.f32.mrb[0].mxu0
    %2233 = vmatprep.mubr.f32.mxu0 0.0
    %2234 = vmatmul.mubr.f32.gmra.mrb[0].mxu0 %v2146
    %v2235 = vpop.f32.mrb[0].mxu0
    %v2236 = vadd.f32 0.0, %v2235
    %v2237 = vpop.f32.mrb[0].mxu0
    %2238 = vdwg.mxu0
    %v2239 = vadd.f32 %v1959, %v2231
    %v2240 = vadd.f32 %v1960, %v2236
    %s2241 = scalar_lea.vmem %s5, 7
    %v2242 = vld [vmem:[%s2241] sm:$0x1]
    %v2244 = vlaneseq
    %v2245 = vshrl.u32 %v2244, 7
    %v2246 = vsub.s32 0, %v2245
    %v2247 = vrot.slane %v2242, %v2246
    %v2249 = vadd.f32 %v2239, %v2247
    %v2250 = vadd.f32 %v2240, %v2247
    %2251 = vst.msk [vmem:[#allocation2] sm:$0xff] %vm317, %v2249
    %2252 = vst.msk [vmem:[#allocation2 + $0x8] sm:$0xff] %vm317, %v2250
    // Predicated region
    $region26: #{tpu_custom_call.1} parent=1 // pred_check
      _
    $region27: #{tpu_custom_call.1} parent=1 // pred_check_branch
      %2254 = sbr.rel (0) target = $region29
    $region28: #{tpu_custom_call.1} parent=1 // pred_region
      %s2256 = ssub.s32 256, 256
      %2257 = vsyncadd [#allocation3], %s2256
      %s2258 = sshll.u32 [#allocation2], 4
      %s2259 = int_to_ptr.vmem [resolvable:$true] %s2258
      %2264 = dma.vmem_to_hbm [thread:$0]  %s2259, 256, %s6, [#allocation3], 128, 128, 8
    $region29: #{tpu_custom_call.1} parent=1 // pred_fallthru
      _
    // Predicated region
    $region30: #{tpu_custom_call.1} parent=1 // pred_check
      _
    $region31: #{tpu_custom_call.1} parent=1 // pred_check_branch
      %2266 = sbr.rel (0) target = $region33
    $region32: #{tpu_custom_call.1} parent=1 // pred_region
      %2267 = dma.done [#allocation3], 256
    $region33: #{tpu_custom_call.1} parent=1 // pred_fallthru
      _
    %2268 = vsyncpa [#allocation3], 1

</llo_original>
